<compile_context>
chip_gen: v7x
topology: tpu7x:2x2x1
jax: 0.10.0
libtpu: 0.0.40
codegen_flags: <defaults>
</compile_context>

<pallas_src>
import functools

import jax
import jax.numpy as jnp
from jax import lax
from jax.experimental import pallas as pl
from jax.experimental.pallas import tpu as pltpu


def _round_up(a, m):
    return (a + m - 1) // m * m


# ---------------------------------------------------------------------------
# Fused kernel: per (batch, q-tile) multi-head attention + output projection +
# residual + qelos LayerNormalization.
# ---------------------------------------------------------------------------
def _mha_kernel(x_ref, k_ref, v_ref, wq_ref, wk_ref, wv_ref, mask_ref,
                pw_ref, pb_ref, g_ref, beta_ref, out_ref, *rest,
                n_head, d_k, d_v, inv_temper, eps, d_model,
                mm_dtype, emit_attn, attn_dtype):
    if emit_attn:
        attn_ref, k_scr, v_scr, q_scr, y_scr = rest
    else:
        attn_ref = None
        k_scr, v_scr, q_scr, y_scr = rest

    qi = pl.program_id(1)

    # ---- K/V projections: once per batch element, cached in VMEM scratch ----
    @pl.when(qi == 0)
    def _():
        k_scr[...] = jnp.dot(k_ref[0], wk_ref[...],
                             preferred_element_type=jnp.float32).astype(mm_dtype)
        v_scr[...] = jnp.dot(v_ref[0], wv_ref[...],
                             preferred_element_type=jnp.float32).astype(mm_dtype)

    x = x_ref[0]                                    # (TQ, d_model) f32 residual

    # ---- Q projection for this q-tile (1/temper folded into Q) --------------
    q_all = jnp.dot(x.astype(mm_dtype), wq_ref[...],
                    preferred_element_type=jnp.float32) * inv_temper
    q_scr[...] = q_all.astype(mm_dtype)             # stage; per-head slices re-load

    masked = mask_ref[...] > 0.5                    # (TQ, len_k), 1.0 => masked
    neg_big = jnp.float32(-1e30)                    # finite: no NaN for full-mask rows

    y_scr[...] = jnp.zeros_like(y_scr)              # (TQ, d_model) f32 accumulator
    for h in range(n_head):                         # static unroll
        q_h = q_scr[:, h * d_k:(h + 1) * d_k]       # (TQ, d_k)     VMEM load
        k_h = k_scr[:, h * d_k:(h + 1) * d_k]       # (len_k, d_k)  VMEM load
        v_h = v_scr[:, h * d_v:(h + 1) * d_v]       # (len_k, d_v)  VMEM load

        # contract on last dims: no explicit transpose of k_h
        logits = lax.dot_general(q_h, k_h, (((1,), (1,)), ((), ())),
                                 preferred_element_type=jnp.float32)
        logits = jnp.where(masked, neg_big, logits)

        m = jnp.max(logits, axis=-1, keepdims=True)
        p = jnp.exp(logits - m)
        denom = jnp.sum(p, axis=-1, keepdims=True)
        attn = p * pl.reciprocal(denom, approx=True)          # EUP reciprocal

        if emit_attn:
            attn_ref[h, 0] = attn.astype(attn_dtype)          # head-major layout

        ctx = jnp.dot(attn.astype(mm_dtype), v_h,
                      preferred_element_type=jnp.float32)      # (TQ, d_v)
        pw_h = pw_ref[h * d_v:(h + 1) * d_v, :]                # (d_v, d_model)
        # output projection folded into the head loop (no concat, one accumulator)
        y_scr[...] += jnp.dot(ctx.astype(mm_dtype), pw_h,
                              preferred_element_type=jnp.float32)

    # ---- bias + residual + qelos LayerNormalization -------------------------
    z = y_scr[...] + pb_ref[...] + x
    mu = jnp.mean(z, axis=-1, keepdims=True)
    var = jnp.sum((z - mu) ** 2, axis=-1, keepdims=True) / (d_model - 1)
    sigma = jnp.sqrt(var)                            # unbiased std (torch.std)
    inv = pl.reciprocal(sigma + eps, approx=True)    # EUP instead of VALU divide
    out_ref[0] = ((z - mu) * inv) * g_ref[...] + beta_ref[...]


# ---------------------------------------------------------------------------
# Wrapper
# ---------------------------------------------------------------------------
def multi_head_attention(x, k, v, attn_mask_2d, params, n_head, *,
                         use_bf16_matmul=True, return_attn=True,
                         attn_dtype=jnp.float32, q_tile=256, eps=1e-3):
    """Pallas implementation of MultiHeadAttention.forward (eval mode).

    x, k, v       : (mb, len, d_model) float32
    attn_mask_2d  : (len_q, len_k) float32 (1.0 = masked position)
    params        : dict with w_qs/w_ks (d_model, n_head*d_k),
                    w_vs (d_model, n_head*d_v), proj_w (n_head*d_v, d_model),
                    proj_b, ln_gamma, ln_beta (d_model,)
    Returns (output (mb, len_q, d_model),
             attns (n_head*mb, len_q, len_k) or None if return_attn=False).
    """
    mb, len_q, d_model = x.shape
    _, len_k, _ = k.shape
    w_qs, w_ks, w_vs = params["w_qs"], params["w_ks"], params["w_vs"]
    d_k = w_qs.shape[1] // n_head
    d_v = w_vs.shape[1] // n_head
    inv_temper = 1.0 / (float(d_model) ** 0.5)   # module scales by sqrt(d_model)
    mm_dtype = jnp.bfloat16 if use_bf16_matmul else jnp.float32

    # ---- choose query tile (sublane-aligned) and pad len_q if needed --------
    tq_cap = max(8, _round_up(q_tile, 8))
    nq = max(1, -(-len_q // tq_cap))            # ceil
    tq = _round_up(-(-len_q // nq), 8)
    len_q_pad = tq * nq

    mask2d = attn_mask_2d.astype(jnp.float32)
    xp = x
    if len_q_pad != len_q:
        xp = jnp.pad(x, ((0, 0), (0, len_q_pad - len_q), (0, 0)))
        mask2d = jnp.pad(mask2d, ((0, len_q_pad - len_q), (0, 0)))

    # cast matmul operands in the wrapper (halves their DMA bytes in bf16 mode)
    k_in = k.astype(mm_dtype)
    v_in = v.astype(mm_dtype)
    wq = w_qs.astype(mm_dtype)
    wk = w_ks.astype(mm_dtype)
    wv = w_vs.astype(mm_dtype)
    pw = params["proj_w"].astype(mm_dtype)                     # (n_head*d_v, d_model)
    pb = params["proj_b"].reshape(1, d_model).astype(jnp.float32)
    gamma = params["ln_gamma"].reshape(1, d_model).astype(jnp.float32)
    beta = params["ln_beta"].reshape(1, d_model).astype(jnp.float32)

    kernel = functools.partial(
        _mha_kernel, n_head=n_head, d_k=d_k, d_v=d_v,
        inv_temper=inv_temper, eps=eps, d_model=d_model,
        mm_dtype=mm_dtype, emit_attn=return_attn, attn_dtype=attn_dtype)

    out_shapes = [jax.ShapeDtypeStruct((mb, len_q_pad, d_model), jnp.float32)]
    out_specs = [pl.BlockSpec((1, tq, d_model), lambda b, qi: (b, qi, 0))]
    if return_attn:
        out_shapes.append(
            jax.ShapeDtypeStruct((n_head, mb, len_q_pad, len_k), attn_dtype))
        out_specs.append(
            pl.BlockSpec((n_head, 1, tq, len_k), lambda b, qi: (0, b, qi, 0)))

    in_specs = [
        pl.BlockSpec((1, tq, d_model), lambda b, qi: (b, qi, 0)),        # x (q-tiled)
        pl.BlockSpec((1, len_k, d_model), lambda b, qi: (b, 0, 0)),      # k
        pl.BlockSpec((1, len_k, d_model), lambda b, qi: (b, 0, 0)),      # v
        pl.BlockSpec((d_model, n_head * d_k), lambda b, qi: (0, 0)),     # w_qs (fused heads)
        pl.BlockSpec((d_model, n_head * d_k), lambda b, qi: (0, 0)),     # w_ks
        pl.BlockSpec((d_model, n_head * d_v), lambda b, qi: (0, 0)),     # w_vs
        pl.BlockSpec((tq, len_k), lambda b, qi: (qi, 0)),                # 2-D mask
        pl.BlockSpec((n_head * d_v, d_model), lambda b, qi: (0, 0)),     # proj W
        pl.BlockSpec((1, d_model), lambda b, qi: (0, 0)),                # proj bias
        pl.BlockSpec((1, d_model), lambda b, qi: (0, 0)),                # gamma
        pl.BlockSpec((1, d_model), lambda b, qi: (0, 0)),                # beta
    ]

    scratch_shapes = [
        pltpu.VMEM((len_k, n_head * d_k), mm_dtype),   # K projection cache (per batch elem)
        pltpu.VMEM((len_k, n_head * d_v), mm_dtype),   # V projection cache
        pltpu.VMEM((tq, n_head * d_k), mm_dtype),      # staged Q tile (head slices re-load)
        pltpu.VMEM((tq, d_model), jnp.float32),        # output-projection accumulator
    ]

    results = pl.pallas_call(
        kernel,
        out_shape=tuple(out_shapes),
        grid=(mb, nq),
        in_specs=in_specs,
        out_specs=tuple(out_specs),
        scratch_shapes=scratch_shapes,
        compiler_params=pltpu.CompilerParams(
            dimension_semantics=("parallel", "arbitrary")),
    )(xp, k_in, v_in, wq, wk, wv, mask2d, pw, pb, gamma, beta)

    if return_attn:
        out_pad, attn4 = results
    else:
        (out_pad,) = results
        attn4 = None

    out = out_pad[:, :len_q] if len_q_pad != len_q else out_pad
    if return_attn:
        if len_q_pad != len_q:
            attn4 = attn4[:, :, :len_q, :]
        # torch attns shape: (n_head*mb, len_q, len_k), head-major (view reshape)
        attns = attn4.reshape(n_head * mb, len_q, len_k)
        return out, attns
    return out, None


# ---------------------------------------------------------------------------
# Pure-JAX reference (mirrors the torch module, eval mode) for parity checks.
# ---------------------------------------------------------------------------
def _reference(x, k, v, mask2d, params, n_head, eps=1e-3):
    mb, len_q, d_model = x.shape
    _, len_k, _ = k.shape
    d_k = params["w_qs"].shape[1] // n_head
    d_v = params["w_vs"].shape[1] // n_head

    def split_heads(t, w, d):
        p = t.reshape(-1, d_model) @ w
        return p.reshape(mb, -1, n_head, d).transpose(2, 0, 1, 3)  # (H, mb, L, d)

    q_s = split_heads(x, params["w_qs"], d_k)
    k_s = split_heads(k, params["w_ks"], d_k)
    v_s = split_heads(v, params["w_vs"], d_v)
    logits = jnp.einsum("hbqd,hbkd->hbqk", q_s, k_s) / (d_model ** 0.5)
    logits = jnp.where(mask2d[None, None] > 0.5, -1e30, logits)
    attn = jax.nn.softmax(logits, axis=-1)
    ctx = jnp.einsum("hbqk,hbkd->hbqd", attn, v_s)
    cat = jnp.concatenate([ctx[h] for h in range(n_head)], axis=-1)
    y = cat @ params["proj_w"] + params["proj_b"]
    z = y + x
    mu = z.mean(-1, keepdims=True)
    sigma = jnp.sqrt(((z - mu) ** 2).sum(-1, keepdims=True) / (d_model - 1))
    out = (z - mu) / (sigma + eps) * params["ln_gamma"] + params["ln_beta"]
    return out, attn.reshape(n_head * mb, len_q, len_k)


# ---------------------------------------------------------------------------
# Deterministic parameter init (mirrors the module's __init__ shapes).
# ---------------------------------------------------------------------------
def init_params(key, n_head, d_model, d_k, d_v):
    ks = jax.random.split(key, 5)
    std_qk = (2.0 / (d_model + n_head * d_k)) ** 0.5
    std_v = (2.0 / (d_model + n_head * d_v)) ** 0.5
    w_qs = std_qk * jax.random.normal(ks[0], (d_model, n_head * d_k), jnp.float32)
    w_ks = std_qk * jax.random.normal(ks[1], (d_model, n_head * d_k), jnp.float32)
    w_vs = std_v * jax.random.normal(ks[2], (d_model, n_head * d_v), jnp.float32)
    fan_in = n_head * d_v
    std_p = (2.0 / (fan_in + d_model)) ** 0.5
    proj_w = std_p * jax.random.normal(ks[3], (fan_in, d_model), jnp.float32)
    bound = 1.0 / (fan_in ** 0.5)
    proj_b = jax.random.uniform(ks[4], (d_model,), jnp.float32, -bound, bound)
    return {
        "w_qs": w_qs, "w_ks": w_ks, "w_vs": w_vs,
        "proj_w": proj_w, "proj_b": proj_b,
        "ln_gamma": jnp.ones((d_model,), jnp.float32),
        "ln_beta": jnp.zeros((d_model,), jnp.float32),
    }


if __name__ == "__main__":
    n_head, d_model, d_k, d_v = 2, 32, 16, 16
    mb, len_q, len_k = 2, 8, 8

    key = jax.random.PRNGKey(0)
    kx, kk, kv, kp = jax.random.split(key, 4)
    x = jax.random.normal(kx, (mb, len_q, d_model), jnp.float32)
    k = jax.random.normal(kk, (mb, len_k, d_model), jnp.float32)
    v = jax.random.normal(kv, (mb, len_k, d_model), jnp.float32)
    params = init_params(kp, n_head, d_model, d_k, d_v)

    # 2-D attention mask (1.0 = masked), strictly-upper-triangular (causal).
    attn_mask_2d = jnp.triu(jnp.ones((len_q, len_k), jnp.float32), k=1)

    # Fast path: bf16 MXU operands (f32 accumulation), attn probs returned.
    out, attns = multi_head_attention(x, k, v, attn_mask_2d, params, n_head)
    jax.block_until_ready((out, attns))
    assert out.shape == (mb, len_q, d_model)
    assert attns.shape == (n_head * mb, len_q, len_k)
    assert bool(jnp.all(jnp.isfinite(out))) and bool(jnp.all(jnp.isfinite(attns)))

    # No-attention-output path (store-traffic saving mode).
    out_only, _ = multi_head_attention(x, k, v, attn_mask_2d, params, n_head,
                                       return_attn=False)
    jax.block_until_ready(out_only)
    assert out_only.shape == (mb, len_q, d_model)

    # f32 parity path vs pure-JAX reference (loose tol: approx EUP reciprocals).
    out32, attns32 = multi_head_attention(x, k, v, attn_mask_2d, params, n_head,
                                          use_bf16_matmul=False)
    ref_out, ref_attn = _reference(x, k, v, attn_mask_2d, params, n_head)
    jax.block_until_ready((out32, attns32))
    assert bool(jnp.allclose(out32, ref_out, atol=5e-2, rtol=5e-2))
    assert bool(jnp.allclose(attns32, ref_attn, atol=1e-2, rtol=1e-2))

    print("KERNEL_OK")
</pallas_src>

<mosaic_0001>
module attributes {stable_mosaic.version = 11 : i64} {
  func.func @_mha_kernel(%arg0: i32, %arg1: i32, %arg2: memref<1x8x32xf32, #tpu.memory_space<vmem>>, %arg3: memref<1x8x32xbf16, #tpu.memory_space<vmem>>, %arg4: memref<1x8x32xbf16, #tpu.memory_space<vmem>>, %arg5: memref<32x32xbf16, #tpu.memory_space<vmem>>, %arg6: memref<32x32xbf16, #tpu.memory_space<vmem>>, %arg7: memref<32x32xbf16, #tpu.memory_space<vmem>>, %arg8: memref<8x8xf32, #tpu.memory_space<vmem>>, %arg9: memref<32x32xbf16, #tpu.memory_space<vmem>>, %arg10: memref<1x32xf32, #tpu.memory_space<vmem>>, %arg11: memref<1x32xf32, #tpu.memory_space<vmem>>, %arg12: memref<1x32xf32, #tpu.memory_space<vmem>>, %arg13: memref<1x8x32xf32, #tpu.memory_space<vmem>>, %arg14: memref<2x1x8x8xf32, #tpu.memory_space<vmem>>, %arg15: memref<8x32xbf16, #tpu.memory_space<vmem>>, %arg16: memref<8x32xbf16, #tpu.memory_space<vmem>>, %arg17: memref<8x32xbf16, #tpu.memory_space<vmem>>, %arg18: memref<8x32xf32, #tpu.memory_space<vmem>>) attributes {dimension_semantics = [#tpu.dimension_semantics<parallel>, #tpu.dimension_semantics<arbitrary>], iteration_bounds = array<i64: 2, 1>, scalar_prefetch = 0 : i64, scratch_operands = 4 : i64, tpu.core_type = #tpu.core_type<tc>, window_params = [{transform_indices = @transform_0, window_bounds = array<i64: 1, 8, 32>}, {transform_indices = @transform_1, window_bounds = array<i64: 1, 8, 32>}, {transform_indices = @transform_2, window_bounds = array<i64: 1, 8, 32>}, {pipeline_mode = #tpu.pipeline_mode<synchronous>, transform_indices = @transform_3, window_bounds = array<i64: 32, 32>}, {pipeline_mode = #tpu.pipeline_mode<synchronous>, transform_indices = @transform_4, window_bounds = array<i64: 32, 32>}, {pipeline_mode = #tpu.pipeline_mode<synchronous>, transform_indices = @transform_5, window_bounds = array<i64: 32, 32>}, {transform_indices = @transform_6, window_bounds = array<i64: 8, 8>}, {pipeline_mode = #tpu.pipeline_mode<synchronous>, transform_indices = @transform_7, window_bounds = array<i64: 32, 32>}, {pipeline_mode = #tpu.pipeline_mode<synchronous>, transform_indices = @transform_8, window_bounds = array<i64: 1, 32>}, {pipeline_mode = #tpu.pipeline_mode<synchronous>, transform_indices = @transform_9, window_bounds = array<i64: 1, 32>}, {pipeline_mode = #tpu.pipeline_mode<synchronous>, transform_indices = @transform_10, window_bounds = array<i64: 1, 32>}, {transform_indices = @transform_11, window_bounds = array<i64: 1, 8, 32>}, {transform_indices = @transform_12, window_bounds = array<i64: 2, 1, 8, 8>}]} {
    %c0_i32 = arith.constant 0 : i32
    %0 = arith.cmpi eq, %arg1, %c0_i32 : i32
    %1 = arith.extui %0 : i1 to i32
    %c0_i32_0 = arith.constant 0 : i32
    %2 = arith.cmpi ne, %1, %c0_i32_0 : i32
    scf.if %2 {
      %c0_72 = arith.constant 0 : index
      %c0_73 = arith.constant 0 : index
      %c0_74 = arith.constant 0 : index
      %104 = vector.load %arg3[%c0_72, %c0_73, %c0_74] : memref<1x8x32xbf16, #tpu.memory_space<vmem>>, vector<1x8x32xbf16>
      %105 = vector.shape_cast %104 : vector<1x8x32xbf16> to vector<8x32xbf16>
      %c0_75 = arith.constant 0 : index
      %c0_76 = arith.constant 0 : index
      %106 = vector.load %arg6[%c0_75, %c0_76] : memref<32x32xbf16, #tpu.memory_space<vmem>>, vector<32x32xbf16>
      %cst_77 = arith.constant dense<0.000000e+00> : vector<8x32xf32>
      %107 = tpu.matmul %105, %106, %cst_77 {dimension_numbers = #tpu.dot_dimension_numbers<[1], [0], [0], [1], [0, 0, 1, 1], [], []>} : vector<8x32xbf16>, vector<32x32xbf16>, vector<8x32xf32> -> vector<8x32xf32>
      %108 = arith.truncf %107 : vector<8x32xf32> to vector<8x32xbf16>
      %c0_78 = arith.constant 0 : index
      %c0_79 = arith.constant 0 : index
      %109 = vector.load %arg15[%c0_78, %c0_79] : memref<8x32xbf16, #tpu.memory_space<vmem>>, vector<8x32xbf16>
      tpu.vector_store %arg15[%c0_78, %c0_79], %108 {strides = array<i32>} : memref<8x32xbf16, #tpu.memory_space<vmem>>, vector<8x32xbf16>,
      %c0_80 = arith.constant 0 : index
      %c0_81 = arith.constant 0 : index
      %c0_82 = arith.constant 0 : index
      %110 = vector.load %arg4[%c0_80, %c0_81, %c0_82] : memref<1x8x32xbf16, #tpu.memory_space<vmem>>, vector<1x8x32xbf16>
      %111 = vector.shape_cast %110 : vector<1x8x32xbf16> to vector<8x32xbf16>
      %c0_83 = arith.constant 0 : index
      %c0_84 = arith.constant 0 : index
      %112 = vector.load %arg7[%c0_83, %c0_84] : memref<32x32xbf16, #tpu.memory_space<vmem>>, vector<32x32xbf16>
      %cst_85 = arith.constant dense<0.000000e+00> : vector<8x32xf32>
      %113 = tpu.matmul %111, %112, %cst_85 {dimension_numbers = #tpu.dot_dimension_numbers<[1], [0], [0], [1], [0, 0, 1, 1], [], []>} : vector<8x32xbf16>, vector<32x32xbf16>, vector<8x32xf32> -> vector<8x32xf32>
      %114 = arith.truncf %113 : vector<8x32xf32> to vector<8x32xbf16>
      %c0_86 = arith.constant 0 : index
      %c0_87 = arith.constant 0 : index
      %115 = vector.load %arg16[%c0_86, %c0_87] : memref<8x32xbf16, #tpu.memory_space<vmem>>, vector<8x32xbf16>
      tpu.vector_store %arg16[%c0_86, %c0_87], %114 {strides = array<i32>} : memref<8x32xbf16, #tpu.memory_space<vmem>>, vector<8x32xbf16>,
    } else {
    }
    %c0 = arith.constant 0 : index
    %c0_1 = arith.constant 0 : index
    %c0_2 = arith.constant 0 : index
    %3 = vector.load %arg2[%c0, %c0_1, %c0_2] : memref<1x8x32xf32, #tpu.memory_space<vmem>>, vector<1x8x32xf32>
    %4 = vector.shape_cast %3 : vector<1x8x32xf32> to vector<8x32xf32>
    %5 = arith.truncf %4 : vector<8x32xf32> to vector<8x32xbf16>
    %c0_3 = arith.constant 0 : index
    %c0_4 = arith.constant 0 : index
    %6 = vector.load %arg5[%c0_3, %c0_4] : memref<32x32xbf16, #tpu.memory_space<vmem>>, vector<32x32xbf16>
    %cst = arith.constant dense<0.000000e+00> : vector<8x32xf32>
    %7 = tpu.matmul %5, %6, %cst {dimension_numbers = #tpu.dot_dimension_numbers<[1], [0], [0], [1], [0, 0, 1, 1], [], []>} : vector<8x32xbf16>, vector<32x32xbf16>, vector<8x32xf32> -> vector<8x32xf32>
    %cst_5 = arith.constant 0.176776692 : f32
    %8 = vector.broadcast %cst_5 : f32 to vector<8x32xf32>
    %9 = arith.mulf %7, %8 : vector<8x32xf32>
    %10 = arith.truncf %9 : vector<8x32xf32> to vector<8x32xbf16>
    %c0_6 = arith.constant 0 : index
    %c0_7 = arith.constant 0 : index
    %11 = vector.load %arg17[%c0_6, %c0_7] : memref<8x32xbf16, #tpu.memory_space<vmem>>, vector<8x32xbf16>
    tpu.vector_store %arg17[%c0_6, %c0_7], %10 {strides = array<i32>} : memref<8x32xbf16, #tpu.memory_space<vmem>>, vector<8x32xbf16>,
    %c0_8 = arith.constant 0 : index
    %c0_9 = arith.constant 0 : index
    %12 = vector.load %arg8[%c0_8, %c0_9] : memref<8x8xf32, #tpu.memory_space<vmem>>, vector<8x8xf32>
    %cst_10 = arith.constant 5.000000e-01 : f32
    %13 = vector.broadcast %cst_10 : f32 to vector<8x8xf32>
    %14 = arith.cmpf ogt, %12, %13 : vector<8x8xf32>
    %cst_11 = arith.constant 0.000000e+00 : f32
    %15 = vector.broadcast %cst_11 : f32 to vector<8x32xf32>
    %c0_12 = arith.constant 0 : index
    %c0_13 = arith.constant 0 : index
    %16 = vector.load %arg18[%c0_12, %c0_13] : memref<8x32xf32, #tpu.memory_space<vmem>>, vector<8x32xf32>
    tpu.vector_store %arg18[%c0_12, %c0_13], %15 {strides = array<i32>} : memref<8x32xf32, #tpu.memory_space<vmem>>, vector<8x32xf32>,
    %c0_14 = arith.constant 0 : index
    %c0_15 = arith.constant 0 : index
    %17 = vector.load %arg17[%c0_14, %c0_15] : memref<8x32xbf16, #tpu.memory_space<vmem>>, vector<8x16xbf16>
    %c0_16 = arith.constant 0 : index
    %c0_17 = arith.constant 0 : index
    %18 = vector.load %arg15[%c0_16, %c0_17] : memref<8x32xbf16, #tpu.memory_space<vmem>>, vector<8x16xbf16>
    %c0_18 = arith.constant 0 : index
    %c0_19 = arith.constant 0 : index
    %19 = vector.load %arg16[%c0_18, %c0_19] : memref<8x32xbf16, #tpu.memory_space<vmem>>, vector<8x16xbf16>
    %cst_20 = arith.constant dense<0.000000e+00> : vector<8x8xf32>
    %20 = tpu.matmul %17, %18, %cst_20 {dimension_numbers = #tpu.dot_dimension_numbers<[1], [1], [0], [0], [0, 0, 1, 0], [], []>} : vector<8x16xbf16>, vector<8x16xbf16>, vector<8x8xf32> -> vector<8x8xf32>
    %cst_21 = arith.constant -1.000000e+30 : f32
    %21 = vector.broadcast %cst_21 : f32 to vector<8x8xf32>
    %22 = arith.select %14, %21, %20 : vector<8x8xi1>, vector<8x8xf32>
    %cst_22 = arith.constant dense<0xFF800000> : vector<8xf32>
    %23 = vector.multi_reduction <maximumf>, %22, %cst_22 [1] : vector<8x8xf32> to vector<8xf32>
    %24 = vector.shape_cast %23 : vector<8xf32> to vector<8x1xf32>
    %25 = vector.broadcast %24 : vector<8x1xf32> to vector<8x8xf32>
    %26 = arith.subf %22, %25 : vector<8x8xf32>
    %27 = math.exp %26 : vector<8x8xf32>
    %cst_23 = arith.constant dense<0.000000e+00> : vector<8xf32>
    %28 = vector.multi_reduction <add>, %27, %cst_23 [1] : vector<8x8xf32> to vector<8xf32>
    %29 = vector.shape_cast %28 : vector<8xf32> to vector<8x1xf32>
    %30 = tpu.reciprocal %29 {approx = true} : vector<8x1xf32> -> vector<8x1xf32>
    %31 = vector.broadcast %30 : vector<8x1xf32> to vector<8x8xf32>
    %32 = arith.mulf %27, %31 : vector<8x8xf32>
    %c0_24 = arith.constant 0 : index
    %c0_25 = arith.constant 0 : index
    %c0_26 = arith.constant 0 : index
    %c0_27 = arith.constant 0 : index
    %33 = vector.load %arg14[%c0_24, %c0_25, %c0_26, %c0_27] : memref<2x1x8x8xf32, #tpu.memory_space<vmem>>, vector<1x1x8x8xf32>
    %34 = vector.shape_cast %33 : vector<1x1x8x8xf32> to vector<8x8xf32>
    %35 = vector.shape_cast %32 : vector<8x8xf32> to vector<1x1x8x8xf32>
    tpu.vector_store %arg14[%c0_24, %c0_25, %c0_26, %c0_27], %35 {strides = array<i32>} : memref<2x1x8x8xf32, #tpu.memory_space<vmem>>, vector<1x1x8x8xf32>,
    %36 = arith.truncf %32 : vector<8x8xf32> to vector<8x8xbf16>
    %cst_28 = arith.constant dense<0.000000e+00> : vector<8x16xf32>
    %37 = tpu.matmul %36, %19, %cst_28 {dimension_numbers = #tpu.dot_dimension_numbers<[1], [0], [0], [1], [0, 0, 1, 1], [], []>} : vector<8x8xbf16>, vector<8x16xbf16>, vector<8x16xf32> -> vector<8x16xf32>
    %c0_29 = arith.constant 0 : index
    %c0_30 = arith.constant 0 : index
    %38 = vector.load %arg9[%c0_29, %c0_30] : memref<32x32xbf16, #tpu.memory_space<vmem>>, vector<16x32xbf16>
    %c0_31 = arith.constant 0 : index
    %c0_32 = arith.constant 0 : index
    %39 = vector.load %arg18[%c0_31, %c0_32] : memref<8x32xf32, #tpu.memory_space<vmem>>, vector<8x32xf32>
    %40 = arith.truncf %37 : vector<8x16xf32> to vector<8x16xbf16>
    %cst_33 = arith.constant dense<0.000000e+00> : vector<8x32xf32>
    %41 = tpu.matmul %40, %38, %cst_33 {dimension_numbers = #tpu.dot_dimension_numbers<[1], [0], [0], [1], [0, 0, 1, 1], [], []>} : vector<8x16xbf16>, vector<16x32xbf16>, vector<8x32xf32> -> vector<8x32xf32>
    %42 = arith.addf %39, %41 : vector<8x32xf32>
    %c0_34 = arith.constant 0 : index
    %c0_35 = arith.constant 0 : index
    %43 = vector.load %arg18[%c0_34, %c0_35] : memref<8x32xf32, #tpu.memory_space<vmem>>, vector<8x32xf32>
    tpu.vector_store %arg18[%c0_34, %c0_35], %42 {strides = array<i32>} : memref<8x32xf32, #tpu.memory_space<vmem>>, vector<8x32xf32>,
    %c0_36 = arith.constant 0 : index
    %c16 = arith.constant 16 : index
    %44 = vector.load %arg17[%c0_36, %c16] : memref<8x32xbf16, #tpu.memory_space<vmem>>, vector<8x16xbf16>
    %c0_37 = arith.constant 0 : index
    %c16_38 = arith.constant 16 : index
    %45 = vector.load %arg15[%c0_37, %c16_38] : memref<8x32xbf16, #tpu.memory_space<vmem>>, vector<8x16xbf16>
    %c0_39 = arith.constant 0 : index
    %c16_40 = arith.constant 16 : index
    %46 = vector.load %arg16[%c0_39, %c16_40] : memref<8x32xbf16, #tpu.memory_space<vmem>>, vector<8x16xbf16>
    %cst_41 = arith.constant dense<0.000000e+00> : vector<8x8xf32>
    %47 = tpu.matmul %44, %45, %cst_41 {dimension_numbers = #tpu.dot_dimension_numbers<[1], [1], [0], [0], [0, 0, 1, 0], [], []>} : vector<8x16xbf16>, vector<8x16xbf16>, vector<8x8xf32> -> vector<8x8xf32>
    %cst_42 = arith.constant -1.000000e+30 : f32
    %48 = vector.broadcast %cst_42 : f32 to vector<8x8xf32>
    %49 = arith.select %14, %48, %47 : vector<8x8xi1>, vector<8x8xf32>
    %cst_43 = arith.constant dense<0xFF800000> : vector<8xf32>
    %50 = vector.multi_reduction <maximumf>, %49, %cst_43 [1] : vector<8x8xf32> to vector<8xf32>
    %51 = vector.shape_cast %50 : vector<8xf32> to vector<8x1xf32>
    %52 = vector.broadcast %51 : vector<8x1xf32> to vector<8x8xf32>
    %53 = arith.subf %49, %52 : vector<8x8xf32>
    %54 = math.exp %53 : vector<8x8xf32>
    %cst_44 = arith.constant dense<0.000000e+00> : vector<8xf32>
    %55 = vector.multi_reduction <add>, %54, %cst_44 [1] : vector<8x8xf32> to vector<8xf32>
    %56 = vector.shape_cast %55 : vector<8xf32> to vector<8x1xf32>
    %57 = tpu.reciprocal %56 {approx = true} : vector<8x1xf32> -> vector<8x1xf32>
    %58 = vector.broadcast %57 : vector<8x1xf32> to vector<8x8xf32>
    %59 = arith.mulf %54, %58 : vector<8x8xf32>
    %c1 = arith.constant 1 : index
    %c0_45 = arith.constant 0 : index
    %c0_46 = arith.constant 0 : index
    %c0_47 = arith.constant 0 : index
    %60 = vector.load %arg14[%c1, %c0_45, %c0_46, %c0_47] : memref<2x1x8x8xf32, #tpu.memory_space<vmem>>, vector<1x1x8x8xf32>
    %61 = vector.shape_cast %60 : vector<1x1x8x8xf32> to vector<8x8xf32>
    %62 = vector.shape_cast %59 : vector<8x8xf32> to vector<1x1x8x8xf32>
    tpu.vector_store %arg14[%c1, %c0_45, %c0_46, %c0_47], %62 {strides = array<i32>} : memref<2x1x8x8xf32, #tpu.memory_space<vmem>>, vector<1x1x8x8xf32>,
    %63 = arith.truncf %59 : vector<8x8xf32> to vector<8x8xbf16>
    %cst_48 = arith.constant dense<0.000000e+00> : vector<8x16xf32>
    %64 = tpu.matmul %63, %46, %cst_48 {dimension_numbers = #tpu.dot_dimension_numbers<[1], [0], [0], [1], [0, 0, 1, 1], [], []>} : vector<8x8xbf16>, vector<8x16xbf16>, vector<8x16xf32> -> vector<8x16xf32>
    %c16_49 = arith.constant 16 : index
    %c0_50 = arith.constant 0 : index
    %65 = vector.load %arg9[%c16_49, %c0_50] : memref<32x32xbf16, #tpu.memory_space<vmem>>, vector<16x32xbf16>
    %c0_51 = arith.constant 0 : index
    %c0_52 = arith.constant 0 : index
    %66 = vector.load %arg18[%c0_51, %c0_52] : memref<8x32xf32, #tpu.memory_space<vmem>>, vector<8x32xf32>
    %67 = arith.truncf %64 : vector<8x16xf32> to vector<8x16xbf16>
    %cst_53 = arith.constant dense<0.000000e+00> : vector<8x32xf32>
    %68 = tpu.matmul %67, %65, %cst_53 {dimension_numbers = #tpu.dot_dimension_numbers<[1], [0], [0], [1], [0, 0, 1, 1], [], []>} : vector<8x16xbf16>, vector<16x32xbf16>, vector<8x32xf32> -> vector<8x32xf32>
    %69 = arith.addf %66, %68 : vector<8x32xf32>
    %c0_54 = arith.constant 0 : index
    %c0_55 = arith.constant 0 : index
    %70 = vector.load %arg18[%c0_54, %c0_55] : memref<8x32xf32, #tpu.memory_space<vmem>>, vector<8x32xf32>
    tpu.vector_store %arg18[%c0_54, %c0_55], %69 {strides = array<i32>} : memref<8x32xf32, #tpu.memory_space<vmem>>, vector<8x32xf32>,
    %c0_56 = arith.constant 0 : index
    %c0_57 = arith.constant 0 : index
    %71 = vector.load %arg18[%c0_56, %c0_57] : memref<8x32xf32, #tpu.memory_space<vmem>>, vector<8x32xf32>
    %c0_58 = arith.constant 0 : index
    %c0_59 = arith.constant 0 : index
    %72 = vector.load %arg10[%c0_58, %c0_59] : memref<1x32xf32, #tpu.memory_space<vmem>>, vector<1x32xf32>
    %73 = vector.broadcast %72 : vector<1x32xf32> to vector<8x32xf32>
    %74 = arith.addf %71, %73 : vector<8x32xf32>
    %75 = arith.addf %74, %4 : vector<8x32xf32>
    %cst_60 = arith.constant dense<0.000000e+00> : vector<8xf32>
    %76 = vector.multi_reduction <add>, %75, %cst_60 [1] : vector<8x32xf32> to vector<8xf32>
    %77 = vector.shape_cast %76 : vector<8xf32> to vector<8x1xf32>
    %cst_61 = arith.constant 3.200000e+01 : f32
    %78 = vector.broadcast %cst_61 : f32 to vector<8x1xf32>
    %79 = arith.divf %77, %78 : vector<8x1xf32>
    %80 = vector.broadcast %79 : vector<8x1xf32> to vector<8x32xf32>
    %81 = arith.subf %75, %80 : vector<8x32xf32>
    %82 = arith.mulf %81, %81 : vector<8x32xf32>
    %cst_62 = arith.constant dense<0.000000e+00> : vector<8xf32>
    %83 = vector.multi_reduction <add>, %82, %cst_62 [1] : vector<8x32xf32> to vector<8xf32>
    %84 = vector.shape_cast %83 : vector<8xf32> to vector<8x1xf32>
    %cst_63 = arith.constant 3.100000e+01 : f32
    %85 = vector.broadcast %cst_63 : f32 to vector<8x1xf32>
    %86 = arith.divf %84, %85 : vector<8x1xf32>
    %87 = math.sqrt %86 : vector<8x1xf32>
    %cst_64 = arith.constant 1.000000e-03 : f32
    %88 = vector.broadcast %cst_64 : f32 to vector<8x1xf32>
    %89 = arith.addf %87, %88 : vector<8x1xf32>
    %90 = tpu.reciprocal %89 {approx = true} : vector<8x1xf32> -> vector<8x1xf32>
    %91 = vector.broadcast %79 : vector<8x1xf32> to vector<8x32xf32>
    %92 = arith.subf %75, %91 : vector<8x32xf32>
    %93 = vector.broadcast %90 : vector<8x1xf32> to vector<8x32xf32>
    %94 = arith.mulf %92, %93 : vector<8x32xf32>
    %c0_65 = arith.constant 0 : index
    %c0_66 = arith.constant 0 : index
    %95 = vector.load %arg11[%c0_65, %c0_66] : memref<1x32xf32, #tpu.memory_space<vmem>>, vector<1x32xf32>
    %96 = vector.broadcast %95 : vector<1x32xf32> to vector<8x32xf32>
    %97 = arith.mulf %94, %96 : vector<8x32xf32>
    %c0_67 = arith.constant 0 : index
    %c0_68 = arith.constant 0 : index
    %98 = vector.load %arg12[%c0_67, %c0_68] : memref<1x32xf32, #tpu.memory_space<vmem>>, vector<1x32xf32>
    %99 = vector.broadcast %98 : vector<1x32xf32> to vector<8x32xf32>
    %100 = arith.addf %97, %99 : vector<8x32xf32>
    %c0_69 = arith.constant 0 : index
    %c0_70 = arith.constant 0 : index
    %c0_71 = arith.constant 0 : index
    %101 = vector.load %arg13[%c0_69, %c0_70, %c0_71] : memref<1x8x32xf32, #tpu.memory_space<vmem>>, vector<1x8x32xf32>
    %102 = vector.shape_cast %101 : vector<1x8x32xf32> to vector<8x32xf32>
    %103 = vector.shape_cast %100 : vector<8x32xf32> to vector<1x8x32xf32>
    tpu.vector_store %arg13[%c0_69, %c0_70, %c0_71], %103 {strides = array<i32>} : memref<1x8x32xf32, #tpu.memory_space<vmem>>, vector<1x8x32xf32>,
    return
  }
  func.func @transform_0(%arg0: i32, %arg1: i32) -> (i32, i32, i32) {
    %c0_i32 = arith.constant 0 : i32
    %c0_i32_0 = arith.constant 0 : i32
    return %arg0, %arg1, %c0_i32 : i32, i32, i32
  }
  func.func @transform_1(%arg0: i32, %arg1: i32) -> (i32, i32, i32) {
    %c0_i32 = arith.constant 0 : i32
    %c0_i32_0 = arith.constant 0 : i32
    %c0_i32_1 = arith.constant 0 : i32
    return %arg0, %c0_i32, %c0_i32_0 : i32, i32, i32
  }
  func.func @transform_2(%arg0: i32, %arg1: i32) -> (i32, i32, i32) {
    %c0_i32 = arith.constant 0 : i32
    %c0_i32_0 = arith.constant 0 : i32
    %c0_i32_1 = arith.constant 0 : i32
    return %arg0, %c0_i32, %c0_i32_0 : i32, i32, i32
  }
  func.func @transform_3(%arg0: i32, %arg1: i32) -> (i32, i32) {
    %c0_i32 = arith.constant 0 : i32
    %c0_i32_0 = arith.constant 0 : i32
    %c0_i32_1 = arith.constant 0 : i32
    return %c0_i32, %c0_i32_0 : i32, i32
  }
  func.func @transform_4(%arg0: i32, %arg1: i32) -> (i32, i32) {
    %c0_i32 = arith.constant 0 : i32
    %c0_i32_0 = arith.constant 0 : i32
    %c0_i32_1 = arith.constant 0 : i32
    return %c0_i32, %c0_i32_0 : i32, i32
  }
  func.func @transform_5(%arg0: i32, %arg1: i32) -> (i32, i32) {
    %c0_i32 = arith.constant 0 : i32
    %c0_i32_0 = arith.constant 0 : i32
    %c0_i32_1 = arith.constant 0 : i32
    return %c0_i32, %c0_i32_0 : i32, i32
  }
  func.func @transform_6(%arg0: i32, %arg1: i32) -> (i32, i32) {
    %c0_i32 = arith.constant 0 : i32
    %c0_i32_0 = arith.constant 0 : i32
    return %arg1, %c0_i32 : i32, i32
  }
  func.func @transform_7(%arg0: i32, %arg1: i32) -> (i32, i32) {
    %c0_i32 = arith.constant 0 : i32
    %c0_i32_0 = arith.constant 0 : i32
    %c0_i32_1 = arith.constant 0 : i32
    return %c0_i32, %c0_i32_0 : i32, i32
  }
  func.func @transform_8(%arg0: i32, %arg1: i32) -> (i32, i32) {
    %c0_i32 = arith.constant 0 : i32
    %c0_i32_0 = arith.constant 0 : i32
    %c0_i32_1 = arith.constant 0 : i32
    return %c0_i32, %c0_i32_0 : i32, i32
  }
  func.func @transform_9(%arg0: i32, %arg1: i32) -> (i32, i32) {
    %c0_i32 = arith.constant 0 : i32
    %c0_i32_0 = arith.constant 0 : i32
    %c0_i32_1 = arith.constant 0 : i32
    return %c0_i32, %c0_i32_0 : i32, i32
  }
  func.func @transform_10(%arg0: i32, %arg1: i32) -> (i32, i32) {
    %c0_i32 = arith.constant 0 : i32
    %c0_i32_0 = arith.constant 0 : i32
    %c0_i32_1 = arith.constant 0 : i32
    return %c0_i32, %c0_i32_0 : i32, i32
  }
  func.func @transform_11(%arg0: i32, %arg1: i32) -> (i32, i32, i32) {
    %c0_i32 = arith.constant 0 : i32
    %c0_i32_0 = arith.constant 0 : i32
    return %arg0, %arg1, %c0_i32 : i32, i32, i32
  }
  func.func @transform_12(%arg0: i32, %arg1: i32) -> (i32, i32, i32, i32) {
    %c0_i32 = arith.constant 0 : i32
    %c0_i32_0 = arith.constant 0 : i32
    %c0_i32_1 = arith.constant 0 : i32
    return %c0_i32, %arg0, %arg1, %c0_i32_0 : i32, i32, i32, i32
  }
}

</mosaic_0001>

<llo_original>
// kernel: tpu_custom_call.1
$region0: #{tpu_custom_call.1}
  #allocation0 [shape = 'u32[]', space=smem, size = 0x4, offset = 0x4, fixed_abs, tag = 'smem constant byte address 0x4 - core index']
  #allocation1 [shape = 'u32[144,128]{1,0:T(1,128)}', space=vmem, size = 0x12000, scoped, tag = 'internal scratch']
  #allocation2 [shape = 'bf16[8,32]{1,0:T(8,128)(2,1)}', space=vmem, size = 0x800, scoped, tag = 'scratch operand']
  #allocation3 [shape = 'bf16[8,32]{1,0:T(8,128)(2,1)}', space=vmem, size = 0x800, scoped, tag = 'scratch operand']
  #allocation4 [shape = 'bf16[8,32]{1,0:T(8,128)(2,1)}', space=vmem, size = 0x800, scoped, tag = 'scratch operand']
  #allocation5 [shape = 'f32[8,32]{1,0:T(8,128)}', space=vmem, size = 0x1000, scoped, tag = 'scratch operand']
  %s0 = inlined_call_operand.hbm [shape: f32[2,8,32], index: 0, kind: input, shape index: {}]
  %s1 = inlined_call_operand.hbm [shape: bf16[2,8,32], index: 1, kind: input, shape index: {}]
  %s2 = inlined_call_operand.hbm [shape: bf16[2,8,32], index: 2, kind: input, shape index: {}]
  %s3 = inlined_call_operand.hbm [shape: bf16[32,32], index: 3, kind: input, shape index: {}]
  %s4 = inlined_call_operand.hbm [shape: bf16[32,32], index: 4, kind: input, shape index: {}]
  %s5 = inlined_call_operand.vmem [shape: bf16[32,32], index: 5, kind: input, shape index: {}]
  %s6 = inlined_call_operand.hbm [shape: f32[8,8], index: 6, kind: input, shape index: {}]
  %s7 = inlined_call_operand.hbm [shape: bf16[32,32], index: 7, kind: input, shape index: {}]
  %s8 = inlined_call_operand.vmem [shape: f32[1,32], index: 8, kind: input, shape index: {}]
  %s9 = inlined_call_operand.vmem [shape: f32[1,32], index: 9, kind: input, shape index: {}]
  %s10 = inlined_call_operand.vmem [shape: f32[1,32], index: 10, kind: input, shape index: {}]
  %s11 = inlined_call_operand.hbm [shape: f32[2,8,32], index: 11, kind: output, shape index: {0}]
  %s12 = inlined_call_operand.hbm [shape: f32[2,2,8,8], index: 12, kind: output, shape index: {1}]
  %13 = xla_tuple %s11, %s12
  %s14 = sld [smem:[#allocation0]]
  $region117: #{tpu_custom_call.1} parent=0
    _
  %s16 = ssub.s32 1, %s14
  %s17 = scalar_select 0, %s16, %s14
  $region1: #{tpu_custom_call.1} parent=0
    #allocation6 [shape = 'u8[8192]{0}', space=vmem, size = 0x2000, scoped, tag = 'input window, operand 0']
    #allocation7 [shape = 's32[2]{0}', space=sflag, size = 0x8, scoped, tag = 'scoped memory for tpu_custom_call.1']
    #allocation8 [shape = 's32[2]{0}', space=sflag, size = 0x8, scoped, tag = 'scoped memory for tpu_custom_call.1']
    #allocation9 [shape = 'u8[4096]{0}', space=vmem, size = 0x1000, scoped, tag = 'input window, operand 1']
    #allocation10 [shape = 's32[2]{0}', space=sflag, size = 0x8, scoped, tag = 'scoped memory for tpu_custom_call.1']
    #allocation11 [shape = 'u8[4096]{0}', space=vmem, size = 0x1000, scoped, tag = 'input window, operand 2']
    #allocation12 [shape = 'u8[8192]{0}', space=vmem, size = 0x2000, scoped, tag = 'input window, operand 3, single buffered']
    #allocation13 [shape = 's32[1]{0}', space=sflag, size = 0x4, scoped, tag = 'scoped memory for tpu_custom_call.1']
    #allocation14 [shape = 'u8[8192]{0}', space=vmem, size = 0x2000, scoped, tag = 'input window, operand 4, single buffered']
    #allocation15 [shape = 'u8[4096]{0}', space=vmem, size = 0x1000, scoped, tag = 'input window, operand 6, single buffered']
    #allocation16 [shape = 's32[1]{0}', space=sflag, size = 0x4, scoped, tag = 'scoped memory for tpu_custom_call.1']
    #allocation17 [shape = 'u8[8192]{0}', space=vmem, size = 0x2000, scoped, tag = 'input window, operand 7, single buffered']
    #allocation18 [shape = 'u8[8192]{0}', space=vmem, size = 0x2000, scoped, tag = 'output window, operand 0']
    #allocation19 [shape = 'u8[16384]{0}', space=vmem, size = 0x4000, scoped, tag = 'output window, operand 1']
    #allocation20 [shape = 's32[2]{0}', space=sflag, size = 0x8, scoped, tag = 'scoped memory for tpu_custom_call.1']
    %18 = vsyncpa [#allocation7], 0
    %s19 = scalar_lea.sflag [#allocation7], 1
    %20 = vsyncpa %s19, 0
    %21 = vsyncpa [#allocation10], 0
    %s22 = scalar_lea.sflag [#allocation10], 1
    %23 = vsyncpa %s22, 0
    %24 = vsyncpa [#allocation13], 0
    %25 = vsyncpa [#allocation16], 0
    %26 = vsyncpa [#allocation8], 0
    %s27 = scalar_lea.sflag [#allocation8], 1
    %28 = vsyncpa %s27, 0
    %29 = vsyncpa [#allocation20], 0
    %s30 = scalar_lea.sflag [#allocation20], 1
    %31 = vsyncpa %s30, 0
    loop: start=0, step=1, limit=4
    $region2: #{tpu_custom_call.1} parent=1 // loop_pre_header
      _
    $region3: #{tpu_custom_call.1} parent=1 // loop_header
      %s33 = sphi 0, %s37
      %p34 = scmp.ge.s32.totalorder %s33, 4
      %s40 = sphi 0, %s52
      %s41 = sphi 0, %s48
      %s42 = sphi 0, %s40
      %s43 = sphi 0, %s41
      %s44 = sphi 0, %s42
      %s45 = sphi 0, %s43
      %s57 = sphi 0, %s59
      %s60 = sphi 0, %s57
      %s61 = sphi 0, %s60
      %s77 = sphi 0, %s61
      %s83 = sphi 0, %s85
      %s86 = sphi 0, %s83
      %s87 = sphi 0, %s86
      %s103 = sphi 0, %s87
      %s109 = sphi 0, %s111
      %s112 = sphi 0, %s109
      %s113 = sphi 0, %s112
      %s129 = sphi 0, %s113
      %s133 = sphi 0, %s133
      %s135 = sphi 0, %s133
      %s136 = sphi 0, %s135
      %s150 = sphi 0, %s136
      %s154 = sphi 0, %s154
      %s156 = sphi 0, %s154
      %s157 = sphi 0, %s156
      %s171 = sphi 0, %s157
      %s175 = sphi 0, %s175
      %s177 = sphi 0, %s175
      %s178 = sphi 0, %s177
      %s192 = sphi 0, %s178
      %s198 = sphi 0, %s200
      %s201 = sphi 0, %s198
      %s202 = sphi 0, %s201
      %s218 = sphi 0, %s202
      %s222 = sphi 0, %s222
      %s224 = sphi 0, %s222
      %s225 = sphi 0, %s224
      %s239 = sphi 0, %s225
      %s243 = sphi 0, %s243
      %s245 = sphi 0, %s243
      %s246 = sphi 0, %s245
      %s260 = sphi 0, %s246
      %s264 = sphi 0, %s264
      %s266 = sphi 0, %s264
      %s267 = sphi 0, %s266
      %s281 = sphi 0, %s267
      %s285 = sphi 0, %s285
      %s287 = sphi 0, %s285
      %s288 = sphi 0, %s287
      %s302 = sphi 0, %s288
      %s310 = sphi 0, %s312
      %s313 = sphi 0, %s310
      %s314 = sphi 0, %s313
      %s330 = sphi 0, %s314
      %s338 = sphi 0, %s340
      %s341 = sphi 0, %s338
      %s342 = sphi 0, %s341
      %s358 = sphi 0, %s342
    $region4: #{tpu_custom_call.1} parent=1 // loop_header_branch
      %36 = sbr.rel (%p34) target = $region8
    $region5: #{tpu_custom_call.1} parent=1 // loop_body
      %s38 = ssub.s32 %s33, 1
      %s39 = ssub.s32 %s33, 2
      %s46 = sadd.s32 1, %s41
      %p47 = scmp.ge.s32.totalorder %s46, 1
      %s48 = scalar_select %p47, 0, %s46
      %s49 = sadd.s32 1, %s40
      %s50 = scalar_select %p47, %s49, %s40
      %p51 = scmp.ge.s32.totalorder %s50, 2
      %s52 = scalar_select %p51, 0, %s50
      %s53 = ssub.s32 %s40, %s52
      %s54 = ssub.s32 %s41, %s48
      %s55 = sor.u32 %s53, %s54
      %p56 = scmp.eq.s32.totalorder %s55, 0
      %s58 = sadd.s32 %s57, 1
      %s59 = scalar_select %p56, %s57, %s58
      %p62 = pneg %p56
      %p63 = scmp.eq.s32.totalorder %s33, 1
      %p64 = por %p62, %p63
      %p65 = scmp.ne.s32.totalorder %s57, %s60
      %p66 = scmp.eq.s32.totalorder %s33, 0
      %p67 = por %p65, %p66
      %p68 = scmp.ne.s32.totalorder %s57, %s60
      %p69 = scmp.eq.s32.totalorder %s38, 1
      %p70 = por %p68, %p69
      %p71 = scmp.ne.s32.totalorder %s60, %s61
      %p72 = scmp.eq.s32.totalorder %s38, 0
      %p73 = por %p71, %p72
      %p74 = scmp.ne.s32.totalorder %s60, %s61
      %p75 = scmp.eq.s32.totalorder %s39, 1
      %p76 = por %p74, %p75
      %p78 = scmp.ne.s32.totalorder %s61, %s77
      %p79 = scmp.eq.s32.totalorder %s39, 0
      %p80 = por %p78, %p79
      %s81 = ssub.s32 %s40, %s52
      %p82 = scmp.eq.s32.totalorder %s81, 0
      %s84 = sadd.s32 %s83, 1
      %s85 = scalar_select %p82, %s83, %s84
      %p88 = pneg %p82
      %p89 = scmp.eq.s32.totalorder %s33, 1
      %p90 = por %p88, %p89
      %p91 = scmp.ne.s32.totalorder %s83, %s86
      %p92 = scmp.eq.s32.totalorder %s33, 0
      %p93 = por %p91, %p92
      %p94 = scmp.ne.s32.totalorder %s83, %s86
      %p95 = scmp.eq.s32.totalorder %s38, 1
      %p96 = por %p94, %p95
      %p97 = scmp.ne.s32.totalorder %s86, %s87
      %p98 = scmp.eq.s32.totalorder %s38, 0
      %p99 = por %p97, %p98
      %p100 = scmp.ne.s32.totalorder %s86, %s87
      %p101 = scmp.eq.s32.totalorder %s39, 1
      %p102 = por %p100, %p101
      %p104 = scmp.ne.s32.totalorder %s87, %s103
      %p105 = scmp.eq.s32.totalorder %s39, 0
      %p106 = por %p104, %p105
      %s107 = ssub.s32 %s40, %s52
      %p108 = scmp.eq.s32.totalorder %s107, 0
      %s110 = sadd.s32 %s109, 1
      %s111 = scalar_select %p108, %s109, %s110
      %p114 = pneg %p108
      %p115 = scmp.eq.s32.totalorder %s33, 1
      %p116 = por %p114, %p115
      %p117 = scmp.ne.s32.totalorder %s109, %s112
      %p118 = scmp.eq.s32.totalorder %s33, 0
      %p119 = por %p117, %p118
      %p120 = scmp.ne.s32.totalorder %s109, %s112
      %p121 = scmp.eq.s32.totalorder %s38, 1
      %p122 = por %p120, %p121
      %p123 = scmp.ne.s32.totalorder %s112, %s113
      %p124 = scmp.eq.s32.totalorder %s38, 0
      %p125 = por %p123, %p124
      %p126 = scmp.ne.s32.totalorder %s112, %s113
      %p127 = scmp.eq.s32.totalorder %s39, 1
      %p128 = por %p126, %p127
      %p130 = scmp.ne.s32.totalorder %s113, %s129
      %p131 = scmp.eq.s32.totalorder %s39, 0
      %p132 = por %p130, %p131
      %s134 = sadd.s32 %s133, 1
      %p137 = scmp.eq.s32.totalorder %s33, 1
      %p138 = scmp.ne.s32.totalorder %s133, %s135
      %p139 = scmp.eq.s32.totalorder %s33, 0
      %p140 = por %p138, %p139
      %p141 = scmp.ne.s32.totalorder %s133, %s135
      %p142 = scmp.eq.s32.totalorder %s38, 1
      %p143 = por %p141, %p142
      %p144 = scmp.ne.s32.totalorder %s135, %s136
      %p145 = scmp.eq.s32.totalorder %s38, 0
      %p146 = por %p144, %p145
      %p147 = scmp.ne.s32.totalorder %s135, %s136
      %p148 = scmp.eq.s32.totalorder %s39, 1
      %p149 = por %p147, %p148
      %p151 = scmp.ne.s32.totalorder %s136, %s150
      %p152 = scmp.eq.s32.totalorder %s39, 0
      %p153 = por %p151, %p152
      %s155 = sadd.s32 %s154, 1
      %p158 = scmp.eq.s32.totalorder %s33, 1
      %p159 = scmp.ne.s32.totalorder %s154, %s156
      %p160 = scmp.eq.s32.totalorder %s33, 0
      %p161 = por %p159, %p160
      %p162 = scmp.ne.s32.totalorder %s154, %s156
      %p163 = scmp.eq.s32.totalorder %s38, 1
      %p164 = por %p162, %p163
      %p165 = scmp.ne.s32.totalorder %s156, %s157
      %p166 = scmp.eq.s32.totalorder %s38, 0
      %p167 = por %p165, %p166
      %p168 = scmp.ne.s32.totalorder %s156, %s157
      %p169 = scmp.eq.s32.totalorder %s39, 1
      %p170 = por %p168, %p169
      %p172 = scmp.ne.s32.totalorder %s157, %s171
      %p173 = scmp.eq.s32.totalorder %s39, 0
      %p174 = por %p172, %p173
      %s176 = sadd.s32 %s175, 1
      %p179 = scmp.eq.s32.totalorder %s33, 1
      %p180 = scmp.ne.s32.totalorder %s175, %s177
      %p181 = scmp.eq.s32.totalorder %s33, 0
      %p182 = por %p180, %p181
      %p183 = scmp.ne.s32.totalorder %s175, %s177
      %p184 = scmp.eq.s32.totalorder %s38, 1
      %p185 = por %p183, %p184
      %p186 = scmp.ne.s32.totalorder %s177, %s178
      %p187 = scmp.eq.s32.totalorder %s38, 0
      %p188 = por %p186, %p187
      %p189 = scmp.ne.s32.totalorder %s177, %s178
      %p190 = scmp.eq.s32.totalorder %s39, 1
      %p191 = por %p189, %p190
      %p193 = scmp.ne.s32.totalorder %s178, %s192
      %p194 = scmp.eq.s32.totalorder %s39, 0
      %p195 = por %p193, %p194
      %s196 = ssub.s32 %s41, %s48
      %p197 = scmp.eq.s32.totalorder %s196, 0
      %s199 = sadd.s32 %s198, 1
      %s200 = scalar_select %p197, %s198, %s199
      %p203 = pneg %p197
      %p204 = scmp.eq.s32.totalorder %s33, 1
      %p205 = por %p203, %p204
      %p206 = scmp.ne.s32.totalorder %s198, %s201
      %p207 = scmp.eq.s32.totalorder %s33, 0
      %p208 = por %p206, %p207
      %p209 = scmp.ne.s32.totalorder %s198, %s201
      %p210 = scmp.eq.s32.totalorder %s38, 1
      %p211 = por %p209, %p210
      %p212 = scmp.ne.s32.totalorder %s201, %s202
      %p213 = scmp.eq.s32.totalorder %s38, 0
      %p214 = por %p212, %p213
      %p215 = scmp.ne.s32.totalorder %s201, %s202
      %p216 = scmp.eq.s32.totalorder %s39, 1
      %p217 = por %p215, %p216
      %p219 = scmp.ne.s32.totalorder %s202, %s218
      %p220 = scmp.eq.s32.totalorder %s39, 0
      %p221 = por %p219, %p220
      %s223 = sadd.s32 %s222, 1
      %p226 = scmp.eq.s32.totalorder %s33, 1
      %p227 = scmp.ne.s32.totalorder %s222, %s224
      %p228 = scmp.eq.s32.totalorder %s33, 0
      %p229 = por %p227, %p228
      %p230 = scmp.ne.s32.totalorder %s222, %s224
      %p231 = scmp.eq.s32.totalorder %s38, 1
      %p232 = por %p230, %p231
      %p233 = scmp.ne.s32.totalorder %s224, %s225
      %p234 = scmp.eq.s32.totalorder %s38, 0
      %p235 = por %p233, %p234
      %p236 = scmp.ne.s32.totalorder %s224, %s225
      %p237 = scmp.eq.s32.totalorder %s39, 1
      %p238 = por %p236, %p237
      %p240 = scmp.ne.s32.totalorder %s225, %s239
      %p241 = scmp.eq.s32.totalorder %s39, 0
      %p242 = por %p240, %p241
      %s244 = sadd.s32 %s243, 1
      %p247 = scmp.eq.s32.totalorder %s33, 1
      %p248 = scmp.ne.s32.totalorder %s243, %s245
      %p249 = scmp.eq.s32.totalorder %s33, 0
      %p250 = por %p248, %p249
      %p251 = scmp.ne.s32.totalorder %s243, %s245
      %p252 = scmp.eq.s32.totalorder %s38, 1
      %p253 = por %p251, %p252
      %p254 = scmp.ne.s32.totalorder %s245, %s246
      %p255 = scmp.eq.s32.totalorder %s38, 0
      %p256 = por %p254, %p255
      %p257 = scmp.ne.s32.totalorder %s245, %s246
      %p258 = scmp.eq.s32.totalorder %s39, 1
      %p259 = por %p257, %p258
      %p261 = scmp.ne.s32.totalorder %s246, %s260
      %p262 = scmp.eq.s32.totalorder %s39, 0
      %p263 = por %p261, %p262
      %s265 = sadd.s32 %s264, 1
      %p268 = scmp.eq.s32.totalorder %s33, 1
      %p269 = scmp.ne.s32.totalorder %s264, %s266
      %p270 = scmp.eq.s32.totalorder %s33, 0
      %p271 = por %p269, %p270
      %p272 = scmp.ne.s32.totalorder %s264, %s266
      %p273 = scmp.eq.s32.totalorder %s38, 1
      %p274 = por %p272, %p273
      %p275 = scmp.ne.s32.totalorder %s266, %s267
      %p276 = scmp.eq.s32.totalorder %s38, 0
      %p277 = por %p275, %p276
      %p278 = scmp.ne.s32.totalorder %s266, %s267
      %p279 = scmp.eq.s32.totalorder %s39, 1
      %p280 = por %p278, %p279
      %p282 = scmp.ne.s32.totalorder %s267, %s281
      %p283 = scmp.eq.s32.totalorder %s39, 0
      %p284 = por %p282, %p283
      %s286 = sadd.s32 %s285, 1
      %p289 = scmp.eq.s32.totalorder %s33, 1
      %p290 = scmp.ne.s32.totalorder %s285, %s287
      %p291 = scmp.eq.s32.totalorder %s33, 0
      %p292 = por %p290, %p291
      %p293 = scmp.ne.s32.totalorder %s285, %s287
      %p294 = scmp.eq.s32.totalorder %s38, 1
      %p295 = por %p293, %p294
      %p296 = scmp.ne.s32.totalorder %s287, %s288
      %p297 = scmp.eq.s32.totalorder %s38, 0
      %p298 = por %p296, %p297
      %p299 = scmp.ne.s32.totalorder %s287, %s288
      %p300 = scmp.eq.s32.totalorder %s39, 1
      %p301 = por %p299, %p300
      %p303 = scmp.ne.s32.totalorder %s288, %s302
      %p304 = scmp.eq.s32.totalorder %s39, 0
      %p305 = por %p303, %p304
      %s306 = ssub.s32 %s40, %s52
      %s307 = ssub.s32 %s41, %s48
      %s308 = sor.u32 %s306, %s307
      %p309 = scmp.eq.s32.totalorder %s308, 0
      %s311 = sadd.s32 %s310, 1
      %s312 = scalar_select %p309, %s310, %s311
      %p315 = pneg %p309
      %p316 = scmp.eq.s32.totalorder %s33, 1
      %p317 = por %p315, %p316
      %p318 = scmp.ne.s32.totalorder %s310, %s313
      %p319 = scmp.eq.s32.totalorder %s33, 0
      %p320 = por %p318, %p319
      %p321 = scmp.ne.s32.totalorder %s310, %s313
      %p322 = scmp.eq.s32.totalorder %s38, 1
      %p323 = por %p321, %p322
      %p324 = scmp.ne.s32.totalorder %s313, %s314
      %p325 = scmp.eq.s32.totalorder %s38, 0
      %p326 = por %p324, %p325
      %p327 = scmp.ne.s32.totalorder %s313, %s314
      %p328 = scmp.eq.s32.totalorder %s39, 1
      %p329 = por %p327, %p328
      %p331 = scmp.ne.s32.totalorder %s314, %s330
      %p332 = scmp.eq.s32.totalorder %s39, 0
      %p333 = por %p331, %p332
      %s334 = ssub.s32 %s40, %s52
      %s335 = ssub.s32 %s41, %s48
      %s336 = sor.u32 %s334, %s335
      %p337 = scmp.eq.s32.totalorder %s336, 0
      %s339 = sadd.s32 %s338, 1
      %s340 = scalar_select %p337, %s338, %s339
      %p343 = pneg %p337
      %p344 = scmp.eq.s32.totalorder %s33, 1
      %p345 = por %p343, %p344
      %p346 = scmp.ne.s32.totalorder %s338, %s341
      %p347 = scmp.eq.s32.totalorder %s33, 0
      %p348 = por %p346, %p347
      %p349 = scmp.ne.s32.totalorder %s338, %s341
      %p350 = scmp.eq.s32.totalorder %s38, 1
      %p351 = por %p349, %p350
      %p352 = scmp.ne.s32.totalorder %s341, %s342
      %p353 = scmp.eq.s32.totalorder %s38, 0
      %p354 = por %p352, %p353
      %p355 = scmp.ne.s32.totalorder %s341, %s342
      %p356 = scmp.eq.s32.totalorder %s39, 1
      %p357 = por %p355, %p356
      %p359 = scmp.ne.s32.totalorder %s342, %s358
      %p360 = scmp.eq.s32.totalorder %s39, 0
      %p361 = por %p359, %p360
      %p362 = scmp.le.s32.totalorder 1, %s33
      %p363 = scmp.lt.s32.totalorder %s33, 3
      %p364 = pnand %p362, %p363
      %p365 = pneg %p364
      // Predicated region
      $region9: #{tpu_custom_call.1} parent=5 // pred_check
        _
      $region10: #{tpu_custom_call.1} parent=5 // pred_check_branch
        %367 = sbr.rel (%p364) target = $region12
      $region11: #{tpu_custom_call.1} parent=5 // pred_region
        %s368 = ssub.s32 %s33, 1
        // Predicated region
        $region13: #{tpu_custom_call.1} parent=11 // pred_check
          %p369 = pneg %p146
        $region14: #{tpu_custom_call.1} parent=11 // pred_check_branch
          %371 = sbr.rel (%p369) target = $region16
        $region15: #{tpu_custom_call.1} parent=11 // pred_region
          %s373 = ssub.s32 256, 256
          %374 = vsyncadd [#allocation13], %s373
          %s375 = sshll.u32 [#allocation12], 4
          %s376 = int_to_ptr.vmem [resolvable:$true] %s375
          %381 = dma.hbm_to_vmem [thread:$0]  %s3, 256, %s376, [#allocation13], 64, 64, 4
        $region16: #{tpu_custom_call.1} parent=11 // pred_fallthru
          _
        // Predicated region
        $region17: #{tpu_custom_call.1} parent=11 // pred_check
          %p382 = pneg %p167
        $region18: #{tpu_custom_call.1} parent=11 // pred_check_branch
          %384 = sbr.rel (%p382) target = $region20
        $region19: #{tpu_custom_call.1} parent=11 // pred_region
          %s386 = ssub.s32 256, 256
          %387 = vsyncadd [#allocation13], %s386
          %s388 = sshll.u32 [#allocation14], 4
          %s389 = int_to_ptr.vmem [resolvable:$true] %s388
          %394 = dma.hbm_to_vmem [thread:$0]  %s4, 256, %s389, [#allocation13], 64, 64, 4
        $region20: #{tpu_custom_call.1} parent=11 // pred_fallthru
          _
        // Predicated region
        $region21: #{tpu_custom_call.1} parent=11 // pred_check
          %p395 = pneg %p188
        $region22: #{tpu_custom_call.1} parent=11 // pred_check_branch
          %397 = sbr.rel (%p395) target = $region24
        $region23: #{tpu_custom_call.1} parent=11 // pred_region
          _
        $region24: #{tpu_custom_call.1} parent=11 // pred_fallthru
          _
        // Predicated region
        $region25: #{tpu_custom_call.1} parent=11 // pred_check
          %p398 = pneg %p214
        $region26: #{tpu_custom_call.1} parent=11 // pred_check_branch
          %400 = sbr.rel (%p398) target = $region28
        $region27: #{tpu_custom_call.1} parent=11 // pred_region
          %s402 = ssub.s32 128, 128
          %403 = vsyncadd [#allocation16], %s402
          %s404 = smul.addr %s43, 128
          %s405 = scalar_lea.hbm %s6, %s404
          %s407 = sshll.u32 [#allocation15], 4
          %s408 = int_to_ptr.vmem [resolvable:$true] %s407
          %410 = dma.hbm_to_vmem [thread:$0]  %s405, 128, %s408, [#allocation16]
        $region28: #{tpu_custom_call.1} parent=11 // pred_fallthru
          _
        // Predicated region
        $region29: #{tpu_custom_call.1} parent=11 // pred_check
          %p411 = pneg %p235
        $region30: #{tpu_custom_call.1} parent=11 // pred_check_branch
          %413 = sbr.rel (%p411) target = $region32
        $region31: #{tpu_custom_call.1} parent=11 // pred_region
          %s415 = ssub.s32 256, 256
          %416 = vsyncadd [#allocation16], %s415
          %s417 = sshll.u32 [#allocation17], 4
          %s418 = int_to_ptr.vmem [resolvable:$true] %s417
          %423 = dma.hbm_to_vmem [thread:$0]  %s7, 256, %s418, [#allocation16], 64, 64, 4
        $region32: #{tpu_custom_call.1} parent=11 // pred_fallthru
          _
        // Predicated region
        $region33: #{tpu_custom_call.1} parent=11 // pred_check
          %p424 = pneg %p256
        $region34: #{tpu_custom_call.1} parent=11 // pred_check_branch
          %426 = sbr.rel (%p424) target = $region36
        $region35: #{tpu_custom_call.1} parent=11 // pred_region
          _
        $region36: #{tpu_custom_call.1} parent=11 // pred_fallthru
          _
        // Predicated region
        $region37: #{tpu_custom_call.1} parent=11 // pred_check
          %p427 = pneg %p277
        $region38: #{tpu_custom_call.1} parent=11 // pred_check_branch
          %429 = sbr.rel (%p427) target = $region40
        $region39: #{tpu_custom_call.1} parent=11 // pred_region
          _
        $region40: #{tpu_custom_call.1} parent=11 // pred_fallthru
          _
        // Predicated region
        $region41: #{tpu_custom_call.1} parent=11 // pred_check
          %p430 = pneg %p298
        $region42: #{tpu_custom_call.1} parent=11 // pred_check_branch
          %432 = sbr.rel (%p430) target = $region44
        $region43: #{tpu_custom_call.1} parent=11 // pred_region
          _
        $region44: #{tpu_custom_call.1} parent=11 // pred_fallthru
          _
      $region12: #{tpu_custom_call.1} parent=5 // pred_fallthru
        _
      %p433 = scmp.lt.s32.totalorder %s33, 2
      // Predicated region
      $region45: #{tpu_custom_call.1} parent=5 // pred_check
        %p434 = pneg %p433
      $region46: #{tpu_custom_call.1} parent=5 // pred_check_branch
        %436 = sbr.rel (%p434) target = $region48
      $region47: #{tpu_custom_call.1} parent=5 // pred_region
        // Predicated region
        $region49: #{tpu_custom_call.1} parent=47 // pred_check
          %p437 = pneg %p67
        $region50: #{tpu_custom_call.1} parent=47 // pred_check_branch
          %439 = sbr.rel (%p437) target = $region52
        $region51: #{tpu_custom_call.1} parent=47 // pred_region
          %s440 = sand.u32 %s57, 1
          %s441 = scalar_lea.sflag [#allocation7], %s440
          %s442 = sand.u32 %s57, 1
          %s443 = smul.addr %s442, 8
          %s444 = scalar_lea.vmem [#allocation6], %s443
          %s446 = ssub.s32 128, 128
          %447 = vsyncadd %s441, %s446
          %s448 = sadd.s32 %s41, %s40
          %s449 = smul.addr %s448, 128
          %s450 = scalar_lea.hbm %s0, %s449
          %s452 = sshll.u32 %s444, 4
          %s453 = int_to_ptr.vmem [resolvable:$true] %s452
          %455 = dma.hbm_to_vmem [thread:$0]  %s450, 128, %s453, %s441
        $region52: #{tpu_custom_call.1} parent=47 // pred_fallthru
          _
        // Predicated region
        $region53: #{tpu_custom_call.1} parent=47 // pred_check
          %p456 = pneg %p93
        $region54: #{tpu_custom_call.1} parent=47 // pred_check_branch
          %458 = sbr.rel (%p456) target = $region56
        $region55: #{tpu_custom_call.1} parent=47 // pred_region
          %s459 = sand.u32 %s33, 1
          %s460 = scalar_lea.sflag [#allocation10], %s459
          %s461 = sand.u32 %s83, 1
          %s462 = smul.addr %s461, 4
          %s463 = scalar_lea.vmem [#allocation9], %s462
          %s465 = ssub.s32 64, 64
          %466 = vsyncadd %s460, %s465
          %s467 = smul.addr %s40, 64
          %s468 = scalar_lea.hbm %s1, %s467
          %s470 = sshll.u32 %s463, 4
          %s471 = int_to_ptr.vmem [resolvable:$true] %s470
          %473 = dma.hbm_to_vmem [thread:$0]  %s468, 64, %s471, %s460
        $region56: #{tpu_custom_call.1} parent=47 // pred_fallthru
          _
        // Predicated region
        $region57: #{tpu_custom_call.1} parent=47 // pred_check
          %p474 = pneg %p119
        $region58: #{tpu_custom_call.1} parent=47 // pred_check_branch
          %476 = sbr.rel (%p474) target = $region60
        $region59: #{tpu_custom_call.1} parent=47 // pred_region
          %s477 = sand.u32 %s33, 1
          %s478 = scalar_lea.sflag [#allocation10], %s477
          %s479 = sand.u32 %s109, 1
          %s480 = smul.addr %s479, 4
          %s481 = scalar_lea.vmem [#allocation11], %s480
          %s483 = ssub.s32 64, 64
          %484 = vsyncadd %s478, %s483
          %s485 = smul.addr %s40, 64
          %s486 = scalar_lea.hbm %s2, %s485
          %s488 = sshll.u32 %s481, 4
          %s489 = int_to_ptr.vmem [resolvable:$true] %s488
          %491 = dma.hbm_to_vmem [thread:$0]  %s486, 64, %s489, %s478
        $region60: #{tpu_custom_call.1} parent=47 // pred_fallthru
          _
      $region48: #{tpu_custom_call.1} parent=5 // pred_fallthru
        _
      %p492 = scmp.le.s32.totalorder 1, %s33
      %p493 = scmp.lt.s32.totalorder %s33, 3
      %p494 = pnand %p492, %p493
      %p495 = pneg %p494
      // Predicated region
      $region61: #{tpu_custom_call.1} parent=5 // pred_check
        _
      $region62: #{tpu_custom_call.1} parent=5 // pred_check_branch
        %497 = sbr.rel (%p494) target = $region64
      $region63: #{tpu_custom_call.1} parent=5 // pred_region
        %s498 = ssub.s32 %s33, 1
        %s499 = sand.u32 %s60, 1
        %s500 = scalar_lea.sflag [#allocation7], %s499
        %s501 = sand.u32 %s60, 1
        %s502 = smul.addr %s501, 8
        %s503 = scalar_lea.vmem [#allocation6], %s502
        // Predicated region
        $region65: #{tpu_custom_call.1} parent=63 // pred_check
          %p504 = pneg %p73
        $region66: #{tpu_custom_call.1} parent=63 // pred_check_branch
          %506 = sbr.rel (%p504) target = $region68
        $region67: #{tpu_custom_call.1} parent=63 // pred_region
          %507 = dma.done %s500, 128
        $region68: #{tpu_custom_call.1} parent=63 // pred_fallthru
          _
        %s508 = sand.u32 %s38, 1
        %s509 = scalar_lea.sflag [#allocation10], %s508
        %s510 = sand.u32 %s86, 1
        %s511 = smul.addr %s510, 4
        %s512 = scalar_lea.vmem [#allocation9], %s511
        // Predicated region
        $region69: #{tpu_custom_call.1} parent=63 // pred_check
          %p513 = pneg %p99
        $region70: #{tpu_custom_call.1} parent=63 // pred_check_branch
          %515 = sbr.rel (%p513) target = $region72
        $region71: #{tpu_custom_call.1} parent=63 // pred_region
          %516 = dma.done %s509, 64
        $region72: #{tpu_custom_call.1} parent=63 // pred_fallthru
          _
        %s517 = sand.u32 %s38, 1
        %s518 = scalar_lea.sflag [#allocation10], %s517
        %s519 = sand.u32 %s112, 1
        %s520 = smul.addr %s519, 4
        %s521 = scalar_lea.vmem [#allocation11], %s520
        // Predicated region
        $region73: #{tpu_custom_call.1} parent=63 // pred_check
          %p522 = pneg %p125
        $region74: #{tpu_custom_call.1} parent=63 // pred_check_branch
          %524 = sbr.rel (%p522) target = $region76
        $region75: #{tpu_custom_call.1} parent=63 // pred_region
          %525 = dma.done %s518, 64
        $region76: #{tpu_custom_call.1} parent=63 // pred_fallthru
          _
        // Predicated region
        $region77: #{tpu_custom_call.1} parent=63 // pred_check
          %p526 = pneg %p146
        $region78: #{tpu_custom_call.1} parent=63 // pred_check_branch
          %528 = sbr.rel (%p526) target = $region80
        $region79: #{tpu_custom_call.1} parent=63 // pred_region
          %529 = dma.done [#allocation13], 256
        $region80: #{tpu_custom_call.1} parent=63 // pred_fallthru
          _
        // Predicated region
        $region81: #{tpu_custom_call.1} parent=63 // pred_check
          %p530 = pneg %p167
        $region82: #{tpu_custom_call.1} parent=63 // pred_check_branch
          %532 = sbr.rel (%p530) target = $region84
        $region83: #{tpu_custom_call.1} parent=63 // pred_region
          %533 = dma.done [#allocation13], 256
        $region84: #{tpu_custom_call.1} parent=63 // pred_fallthru
          _
        // Predicated region
        $region85: #{tpu_custom_call.1} parent=63 // pred_check
          %p534 = pneg %p214
        $region86: #{tpu_custom_call.1} parent=63 // pred_check_branch
          %536 = sbr.rel (%p534) target = $region88
        $region87: #{tpu_custom_call.1} parent=63 // pred_region
          %537 = dma.done [#allocation16], 128
        $region88: #{tpu_custom_call.1} parent=63 // pred_fallthru
          _
        // Predicated region
        $region89: #{tpu_custom_call.1} parent=63 // pred_check
          %p538 = pneg %p235
        $region90: #{tpu_custom_call.1} parent=63 // pred_check_branch
          %540 = sbr.rel (%p538) target = $region92
        $region91: #{tpu_custom_call.1} parent=63 // pred_region
          %541 = dma.done [#allocation16], 256
        $region92: #{tpu_custom_call.1} parent=63 // pred_fallthru
          _
        %s542 = sand.u32 %s60, 1
        %s543 = scalar_lea.sflag [#allocation7], %s542
        %s544 = sand.u32 %s60, 1
        %s545 = smul.addr %s544, 8
        %s546 = scalar_lea.vmem [#allocation6], %s545
        %p547 = pneg %p73
        %p548 = pneg %p70
        %s549 = sand.u32 %s38, 1
        %s550 = scalar_lea.sflag [#allocation10], %s549
        %s551 = sand.u32 %s86, 1
        %s552 = smul.addr %s551, 4
        %s553 = scalar_lea.vmem [#allocation9], %s552
        %p554 = pneg %p99
        %p555 = pneg %p96
        %s556 = sand.u32 %s38, 1
        %s557 = scalar_lea.sflag [#allocation10], %s556
        %s558 = sand.u32 %s112, 1
        %s559 = smul.addr %s558, 4
        %s560 = scalar_lea.vmem [#allocation11], %s559
        %p561 = pneg %p125
        %p562 = pneg %p122
        %p563 = pneg %p146
        %p564 = pneg %p143
        %p565 = pneg %p167
        %p566 = pneg %p164
        %p567 = pneg %p188
        %p568 = pneg %p185
        %p569 = pneg %p214
        %p570 = pneg %p211
        %p571 = pneg %p235
        %p572 = pneg %p232
        %p573 = pneg %p256
        %p574 = pneg %p253
        %p575 = pneg %p277
        %p576 = pneg %p274
        %p577 = pneg %p298
        %p578 = pneg %p295
        %p579 = pneg %p326
        %p580 = pneg %p323
        %s581 = sand.u32 %s313, 1
        %s582 = scalar_lea.sflag [#allocation8], %s581
        %s583 = sand.u32 %s313, 1
        %s584 = smul.addr %s583, 8
        %s585 = scalar_lea.vmem [#allocation18], %s584
        %p586 = pneg %p354
        %p587 = pneg %p351
        %s588 = sand.u32 %s341, 1
        %s589 = scalar_lea.sflag [#allocation20], %s588
        %s590 = sand.u32 %s341, 1
        %s591 = smul.addr %s590, 16
        %s592 = scalar_lea.vmem [#allocation19], %s591
        %p594 = scmp.eq.s32.totalorder %s43, 0
        // Predicated region
        $region93: #{tpu_custom_call.1} parent=63 // pred_check
          %p595 = pneg %p594
        $region94: #{tpu_custom_call.1} parent=63 // pred_check_branch
          %597 = sbr.rel (%p595) target = $region96
        $region95: #{tpu_custom_call.1} parent=63 // pred_region
          %v598 = vld [vmem:[%s512] sm:$0xf]
          %v599 = vld [vmem:[#allocation14] sm:$0xf]
          %v600 = vld [vmem:[#allocation14 + $0x4] sm:$0xf]
          %v601 = vld [vmem:[#allocation14 + $0x8] sm:$0xf]
          %v602 = vld [vmem:[#allocation14 + $0xc] sm:$0xf]
          %v607 = vunpack.c.l.b16 %v599
          %v608 = vunpack.c.l.b16 %v600
          %v609 = vunpack.c.l.b16 %v601
          %v610 = vunpack.c.l.b16 %v602
          %v611 = vpack.c.b16 %v608, %v607
          %v612 = vpack.c.b16 %v610, %v609
          %vm615 = vcmask 261120
          %v617 = vsel %vm615, %v598, 0
          %619 = vmatprep.subr.bf16.mxu0 0
          %620 = vmatpush1.bf16.msra.mxu0 %v611
          %621 = vmatprep.subr.bf16.mxu0 0
          %622 = vmatpush1.bf16.msra.mxu0 %v612
          %623 = vmatprep.subr.bf16.mxu0 0
          %624 = vmatpush1.bf16.msra.mxu0 0
          %625 = vmatprep.subr.bf16.mxu0 0
          %626 = vmatpush1.bf16.msra.mxu0 0
          %627 = vmatprep.subr.bf16.mxu0 0
          %628 = vmatpush1.bf16.msra.mxu0 0
          %629 = vmatprep.subr.bf16.mxu0 0
          %630 = vmatpush1.bf16.msra.mxu0 0
          %631 = vmatprep.subr.bf16.mxu0 0
          %632 = vmatpush1.bf16.msra.mxu0 0
          %633 = vmatprep.subr.bf16.mxu0 0
          %634 = vmatpush1.bf16.msra.mxu0 0
          %635 = vmatprep.subr.bf16.mxu0 0
          %636 = vmatpush1.bf16.msra.mxu0 0
          %637 = vmatprep.subr.bf16.mxu0 0
          %638 = vmatpush1.bf16.msra.mxu0 0
          %639 = vmatprep.subr.bf16.mxu0 0
          %640 = vmatpush1.bf16.msra.mxu0 0
          %641 = vmatprep.subr.bf16.mxu0 0
          %642 = vmatpush1.bf16.msra.mxu0 0
          %643 = vmatprep.subr.bf16.mxu0 0
          %644 = vmatpush1.bf16.msra.mxu0 0
          %645 = vmatprep.subr.bf16.mxu0 0
          %646 = vmatpush1.bf16.msra.mxu0 0
          %647 = vmatprep.subr.bf16.mxu0 0
          %648 = vmatpush1.bf16.msra.mxu0 0
          %649 = vmatprep.subr.bf16.mxu0 0
          %650 = vmatpush1.bf16.msra.mxu0 0
          %651 = vmatprep.mubr.bf16.mxu0 0
          %652 = vmatmul.mubr.bf16.gmra.mrb[0].mxu0 %v617
          %v653 = vpop.f32.mrb[0].mxu0
          %v654 = vadd.f32 0.0, %v653
          %v655 = vpop.f32.mrb[0].mxu0
          %v656 = vpop.f32.mrb[0].mxu0
          %v657 = vpop.f32.mrb[0].mxu0
          %658 = vdwg.mxu0
          %v659 = vpack.c.bf16 %v654, %v654
          %vm660 = vcmask 257024
          %661 = vst.msk [vmem:[#allocation2] sm:$0xf] %vm660, %v659
          %v662 = vld [vmem:[%s521] sm:$0xf]
          %v663 = vld [vmem:[%s5] sm:$0xf]
          %v664 = vld [vmem:[%s5 + $0x4] sm:$0xf]
          %v665 = vld [vmem:[%s5 + $0x8] sm:$0xf]
          %v666 = vld [vmem:[%s5 + $0xc] sm:$0xf]
          %v671 = vunpack.c.l.b16 %v663
          %v672 = vunpack.c.l.b16 %v664
          %v673 = vunpack.c.l.b16 %v665
          %v674 = vunpack.c.l.b16 %v666
          %v675 = vpack.c.b16 %v672, %v671
          %v676 = vpack.c.b16 %v674, %v673
          %v680 = vsel %vm615, %v662, 0
          %682 = vmatprep.subr.bf16.mxu0 0
          %683 = vmatpush1.bf16.msra.mxu0 %v675
          %684 = vmatprep.subr.bf16.mxu0 0
          %685 = vmatpush1.bf16.msra.mxu0 %v676
          %686 = vmatprep.subr.bf16.mxu0 0
          %687 = vmatpush1.bf16.msra.mxu0 0
          %688 = vmatprep.subr.bf16.mxu0 0
          %689 = vmatpush1.bf16.msra.mxu0 0
          %690 = vmatprep.subr.bf16.mxu0 0
          %691 = vmatpush1.bf16.msra.mxu0 0
          %692 = vmatprep.subr.bf16.mxu0 0
          %693 = vmatpush1.bf16.msra.mxu0 0
          %694 = vmatprep.subr.bf16.mxu0 0
          %695 = vmatpush1.bf16.msra.mxu0 0
          %696 = vmatprep.subr.bf16.mxu0 0
          %697 = vmatpush1.bf16.msra.mxu0 0
          %698 = vmatprep.subr.bf16.mxu0 0
          %699 = vmatpush1.bf16.msra.mxu0 0
          %700 = vmatprep.subr.bf16.mxu0 0
          %701 = vmatpush1.bf16.msra.mxu0 0
          %702 = vmatprep.subr.bf16.mxu0 0
          %703 = vmatpush1.bf16.msra.mxu0 0
          %704 = vmatprep.subr.bf16.mxu0 0
          %705 = vmatpush1.bf16.msra.mxu0 0
          %706 = vmatprep.subr.bf16.mxu0 0
          %707 = vmatpush1.bf16.msra.mxu0 0
          %708 = vmatprep.subr.bf16.mxu0 0
          %709 = vmatpush1.bf16.msra.mxu0 0
          %710 = vmatprep.subr.bf16.mxu0 0
          %711 = vmatpush1.bf16.msra.mxu0 0
          %712 = vmatprep.subr.bf16.mxu0 0
          %713 = vmatpush1.bf16.msra.mxu0 0
          %714 = vmatprep.mubr.bf16.mxu0 0
          %715 = vmatmul.mubr.bf16.gmra.mrb[0].mxu0 %v680
          %v716 = vpop.f32.mrb[0].mxu0
          %v717 = vadd.f32 0.0, %v716
          %v718 = vpop.f32.mrb[0].mxu0
          %v719 = vpop.f32.mrb[0].mxu0
          %v720 = vpop.f32.mrb[0].mxu0
          %721 = vdwg.mxu0
          %v722 = vpack.c.bf16 %v717, %v717
          %723 = vst.msk [vmem:[#allocation3] sm:$0xf] %vm660, %v722
        $region96: #{tpu_custom_call.1} parent=63 // pred_fallthru
          _
        %v724 = vld [vmem:[%s503] sm:$0xff]
        %v725 = vpack.c.bf16 %v724, %v724
        %v726 = vld [vmem:[#allocation12] sm:$0xf]
        %v727 = vld [vmem:[#allocation12 + $0x4] sm:$0xf]
        %v728 = vld [vmem:[#allocation12 + $0x8] sm:$0xf]
        %v729 = vld [vmem:[#allocation12 + $0xc] sm:$0xf]
        %v734 = vunpack.c.l.b16 %v726
        %v735 = vunpack.c.l.b16 %v727
        %v736 = vunpack.c.l.b16 %v728
        %v737 = vunpack.c.l.b16 %v729
        %v738 = vpack.c.b16 %v735, %v734
        %v739 = vpack.c.b16 %v737, %v736
        %vm742 = vcmask 261120
        %v744 = vsel %vm742, %v725, 0
        %746 = vmatprep.subr.bf16.mxu0 0
        %747 = vmatpush1.bf16.msra.mxu0 %v738
        %748 = vmatprep.subr.bf16.mxu0 0
        %749 = vmatpush1.bf16.msra.mxu0 %v739
        %750 = vmatprep.subr.bf16.mxu0 0
        %751 = vmatpush1.bf16.msra.mxu0 0
        %752 = vmatprep.subr.bf16.mxu0 0
        %753 = vmatpush1.bf16.msra.mxu0 0
        %754 = vmatprep.subr.bf16.mxu0 0
        %755 = vmatpush1.bf16.msra.mxu0 0
        %756 = vmatprep.subr.bf16.mxu0 0
        %757 = vmatpush1.bf16.msra.mxu0 0
        %758 = vmatprep.subr.bf16.mxu0 0
        %759 = vmatpush1.bf16.msra.mxu0 0
        %760 = vmatprep.subr.bf16.mxu0 0
        %761 = vmatpush1.bf16.msra.mxu0 0
        %762 = vmatprep.subr.bf16.mxu0 0
        %763 = vmatpush1.bf16.msra.mxu0 0
        %764 = vmatprep.subr.bf16.mxu0 0
        %765 = vmatpush1.bf16.msra.mxu0 0
        %766 = vmatprep.subr.bf16.mxu0 0
        %767 = vmatpush1.bf16.msra.mxu0 0
        %768 = vmatprep.subr.bf16.mxu0 0
        %769 = vmatpush1.bf16.msra.mxu0 0
        %770 = vmatprep.subr.bf16.mxu0 0
        %771 = vmatpush1.bf16.msra.mxu0 0
        %772 = vmatprep.subr.bf16.mxu0 0
        %773 = vmatpush1.bf16.msra.mxu0 0
        %774 = vmatprep.subr.bf16.mxu0 0
        %775 = vmatpush1.bf16.msra.mxu0 0
        %776 = vmatprep.subr.bf16.mxu0 0
        %777 = vmatpush1.bf16.msra.mxu0 0
        %778 = vmatprep.mubr.bf16.mxu0 0
        %779 = vmatmul.mubr.bf16.gmra.mrb[0].mxu0 %v744
        %v780 = vpop.f32.mrb[0].mxu0
        %v781 = vadd.f32 0.0, %v780
        %v782 = vpop.f32.mrb[0].mxu0
        %v783 = vpop.f32.mrb[0].mxu0
        %v784 = vpop.f32.mrb[0].mxu0
        %785 = vdwg.mxu0
        %v786 = vmul.f32 %v781, 0.17677669
        %v787 = vpack.c.bf16 %v786, %v786
        %vm788 = vcmask 257024
        %789 = vst.msk [vmem:[#allocation4] sm:$0xf] %vm788, %v787
        %v790 = vld [vmem:[#allocation15] sm:$0xff]
        %vm791 = vcmp.gt.f32.partialorder %v790, 0.5
        %792 = vst.msk [vmem:[#allocation5] sm:$0xff] %vm742, 0.0
        %v793 = vld [vmem:[#allocation4] sm:$0xf]
        %v794 = vld [vmem:[#allocation2] sm:$0xf]
        %v795 = vld [vmem:[#allocation3] sm:$0xf]
        %vm796 = vcmask 130048
        %v798 = vsel %vm796, %v793, 0
        %v801 = vsel %vm796, %v794, 0
        %803 = vmatprep.subr.bf16.mxu0 0
        %804 = vmatpush1.bf16.xpose.msra.mxu0 %v801
        %805 = vmatprep.subr.bf16.mxu0 0
        %806 = vmatpush1.bf16.xpose.msra.mxu0 0
        %807 = vmatprep.subr.bf16.mxu0 0
        %808 = vmatpush1.bf16.xpose.msra.mxu0 0
        %809 = vmatprep.subr.bf16.mxu0 0
        %810 = vmatpush1.bf16.xpose.msra.mxu0 0
        %811 = vmatprep.subr.bf16.mxu0 0
        %812 = vmatpush1.bf16.xpose.msra.mxu0 0
        %813 = vmatprep.subr.bf16.mxu0 0
        %814 = vmatpush1.bf16.xpose.msra.mxu0 0
        %815 = vmatprep.subr.bf16.mxu0 0
        %816 = vmatpush1.bf16.xpose.msra.mxu0 0
        %817 = vmatprep.subr.bf16.mxu0 0
        %818 = vmatpush1.bf16.xpose.msra.mxu0 0
        %819 = vmatprep.subr.bf16.mxu0 0
        %820 = vmatpush1.bf16.xpose.msra.mxu0 0
        %821 = vmatprep.subr.bf16.mxu0 0
        %822 = vmatpush1.bf16.xpose.msra.mxu0 0
        %823 = vmatprep.subr.bf16.mxu0 0
        %824 = vmatpush1.bf16.xpose.msra.mxu0 0
        %825 = vmatprep.subr.bf16.mxu0 0
        %826 = vmatpush1.bf16.xpose.msra.mxu0 0
        %827 = vmatprep.subr.bf16.mxu0 0
        %828 = vmatpush1.bf16.xpose.msra.mxu0 0
        %829 = vmatprep.subr.bf16.mxu0 0
        %830 = vmatpush1.bf16.xpose.msra.mxu0 0
        %831 = vmatprep.subr.bf16.mxu0 0
        %832 = vmatpush1.bf16.xpose.msra.mxu0 0
        %833 = vmatprep.subr.bf16.mxu0 0
        %834 = vmatpush1.bf16.xpose.msra.mxu0 0
        %835 = vmatprep.mubr.bf16.mxu0 0
        %836 = vmatmul.mubr.bf16.gmra.mrb[0].mxu0 %v798
        %v837 = vpop.f32.mrb[0].mxu0
        %v838 = vadd.f32 0.0, %v837
        %v839 = vpop.f32.mrb[0].mxu0
        %v840 = vpop.f32.mrb[0].mxu0
        %v841 = vpop.f32.mrb[0].mxu0
        %842 = vdwg.mxu0
        %v843 = vsel %vm791, -1e+30, %v838
        %vm844 = vcmask 64512
        %v845 = vsel %vm844, %v843, -inf
        %846 = vmax.xlane.f32.xlu0 %v845
        %v847 = vpop.xlane.xlu0 %846
        %v848 = vsub.f32 %v843, %v847
        %v849 = vmul.f32 %v848, 1.442695
        %v850 = vpow.pop %v849
        %v851 = vsel %vm844, %v850, 0.0
        %852 = vadd.xlane.f32.xlu0 %v851
        %v853 = vpop.xlane.xlu0 %852
        %v854 = vrcp.pop %v853
        %v855 = vmul.f32 %v850, %v854
        %856 = vst.msk [vmem:[%s592] sm:$0xff] %vm844, %v855
        %v857 = vpack.c.bf16 %v855, %v855
        %v859 = vsel %vm844, %v857, 0
        %vm861 = vcmask 1043456
        %v863 = vsel %vm861, %v795, 0
        %865 = vmatprep.subr.bf16.mxu0 0
        %866 = vmatpush1.bf16.msra.mxu0 %v863
        %867 = vmatprep.subr.bf16.mxu0 0
        %868 = vmatpush1.bf16.msra.mxu0 0
        %869 = vmatprep.subr.bf16.mxu0 0
        %870 = vmatpush1.bf16.msra.mxu0 0
        %871 = vmatprep.subr.bf16.mxu0 0
        %872 = vmatpush1.bf16.msra.mxu0 0
        %873 = vmatprep.subr.bf16.mxu0 0
        %874 = vmatpush1.bf16.msra.mxu0 0
        %875 = vmatprep.subr.bf16.mxu0 0
        %876 = vmatpush1.bf16.msra.mxu0 0
        %877 = vmatprep.subr.bf16.mxu0 0
        %878 = vmatpush1.bf16.msra.mxu0 0
        %879 = vmatprep.subr.bf16.mxu0 0
        %880 = vmatpush1.bf16.msra.mxu0 0
        %881 = vmatprep.subr.bf16.mxu0 0
        %882 = vmatpush1.bf16.msra.mxu0 0
        %883 = vmatprep.subr.bf16.mxu0 0
        %884 = vmatpush1.bf16.msra.mxu0 0
        %885 = vmatprep.subr.bf16.mxu0 0
        %886 = vmatpush1.bf16.msra.mxu0 0
        %887 = vmatprep.subr.bf16.mxu0 0
        %888 = vmatpush1.bf16.msra.mxu0 0
        %889 = vmatprep.subr.bf16.mxu0 0
        %890 = vmatpush1.bf16.msra.mxu0 0
        %891 = vmatprep.subr.bf16.mxu0 0
        %892 = vmatpush1.bf16.msra.mxu0 0
        %893 = vmatprep.subr.bf16.mxu0 0
        %894 = vmatpush1.bf16.msra.mxu0 0
        %895 = vmatprep.subr.bf16.mxu0 0
        %896 = vmatpush1.bf16.msra.mxu0 0
        %897 = vmatprep.mubr.bf16.mxu0 0
        %898 = vmatmul.mubr.bf16.gmra.mrb[0].mxu0 %v859
        %v899 = vpop.f32.mrb[0].mxu0
        %v900 = vadd.f32 0.0, %v899
        %v901 = vpop.f32.mrb[0].mxu0
        %v902 = vpop.f32.mrb[0].mxu0
        %v903 = vpop.f32.mrb[0].mxu0
        %904 = vdwg.mxu0
        %v905 = vld [vmem:[#allocation17] sm:$0xf]
        %v906 = vld [vmem:[#allocation17 + $0x4] sm:$0xf]
        %v907 = vld [vmem:[#allocation5] sm:$0xff]
        %v908 = vpack.c.bf16 %v900, %v900
        %v911 = vunpack.c.l.b16 %v905
        %v912 = vunpack.c.l.b16 %v906
        %v913 = vpack.c.b16 %v912, %v911
        %v916 = vsel %vm796, %v908, 0
        %918 = vmatprep.subr.bf16.mxu0 0
        %919 = vmatpush1.bf16.msra.mxu0 %v913
        %920 = vmatprep.subr.bf16.mxu0 0
        %921 = vmatpush1.bf16.msra.mxu0 0
        %922 = vmatprep.subr.bf16.mxu0 0
        %923 = vmatpush1.bf16.msra.mxu0 0
        %924 = vmatprep.subr.bf16.mxu0 0
        %925 = vmatpush1.bf16.msra.mxu0 0
        %926 = vmatprep.subr.bf16.mxu0 0
        %927 = vmatpush1.bf16.msra.mxu0 0
        %928 = vmatprep.subr.bf16.mxu0 0
        %929 = vmatpush1.bf16.msra.mxu0 0
        %930 = vmatprep.subr.bf16.mxu0 0
        %931 = vmatpush1.bf16.msra.mxu0 0
        %932 = vmatprep.subr.bf16.mxu0 0
        %933 = vmatpush1.bf16.msra.mxu0 0
        %934 = vmatprep.subr.bf16.mxu0 0
        %935 = vmatpush1.bf16.msra.mxu0 0
        %936 = vmatprep.subr.bf16.mxu0 0
        %937 = vmatpush1.bf16.msra.mxu0 0
        %938 = vmatprep.subr.bf16.mxu0 0
        %939 = vmatpush1.bf16.msra.mxu0 0
        %940 = vmatprep.subr.bf16.mxu0 0
        %941 = vmatpush1.bf16.msra.mxu0 0
        %942 = vmatprep.subr.bf16.mxu0 0
        %943 = vmatpush1.bf16.msra.mxu0 0
        %944 = vmatprep.subr.bf16.mxu0 0
        %945 = vmatpush1.bf16.msra.mxu0 0
        %946 = vmatprep.subr.bf16.mxu0 0
        %947 = vmatpush1.bf16.msra.mxu0 0
        %948 = vmatprep.subr.bf16.mxu0 0
        %949 = vmatpush1.bf16.msra.mxu0 0
        %950 = vmatprep.mubr.bf16.mxu0 0
        %951 = vmatmul.mubr.bf16.gmra.mrb[0].mxu0 %v916
        %v952 = vpop.f32.mrb[0].mxu0
        %v953 = vadd.f32 0.0, %v952
        %v954 = vpop.f32.mrb[0].mxu0
        %v955 = vpop.f32.mrb[0].mxu0
        %v956 = vpop.f32.mrb[0].mxu0
        %957 = vdwg.mxu0
        %v958 = vadd.f32 %v907, %v953
        %959 = vst.msk [vmem:[#allocation5] sm:$0xff] %vm742, %v958
        %v960 = vld [vmem:[#allocation4] sm:$0xf]
        %v961 = vld [vmem:[#allocation2] sm:$0xf]
        %v962 = vld [vmem:[#allocation3] sm:$0xf]
        %v964 = vunpack.c.l.b16 %v960
        %v965 = vpack.c.b16 %v964, %v964
        %966 = vrot.lane.b32.xlu0 %v965, 112
        %v967 = vpop.permute.xlu0 %966
        %v969 = vunpack.c.l.b16 %v961
        %v970 = vpack.c.b16 %v969, %v969
        %971 = vrot.lane.b32.xlu0 %v970, 112
        %v972 = vpop.permute.xlu0 %971
        %v974 = vsel %vm796, %v967, 0
        %v977 = vsel %vm796, %v972, 0
        %979 = vmatprep.subr.bf16.mxu0 0
        %980 = vmatpush1.bf16.xpose.msra.mxu0 %v977
        %981 = vmatprep.subr.bf16.mxu0 0
        %982 = vmatpush1.bf16.xpose.msra.mxu0 0
        %983 = vmatprep.subr.bf16.mxu0 0
        %984 = vmatpush1.bf16.xpose.msra.mxu0 0
        %985 = vmatprep.subr.bf16.mxu0 0
        %986 = vmatpush1.bf16.xpose.msra.mxu0 0
        %987 = vmatprep.subr.bf16.mxu0 0
        %988 = vmatpush1.bf16.xpose.msra.mxu0 0
        %989 = vmatprep.subr.bf16.mxu0 0
        %990 = vmatpush1.bf16.xpose.msra.mxu0 0
        %991 = vmatprep.subr.bf16.mxu0 0
        %992 = vmatpush1.bf16.xpose.msra.mxu0 0
        %993 = vmatprep.subr.bf16.mxu0 0
        %994 = vmatpush1.bf16.xpose.msra.mxu0 0
        %995 = vmatprep.subr.bf16.mxu0 0
        %996 = vmatpush1.bf16.xpose.msra.mxu0 0
        %997 = vmatprep.subr.bf16.mxu0 0
        %998 = vmatpush1.bf16.xpose.msra.mxu0 0
        %999 = vmatprep.subr.bf16.mxu0 0
        %1000 = vmatpush1.bf16.xpose.msra.mxu0 0
        %1001 = vmatprep.subr.bf16.mxu0 0
        %1002 = vmatpush1.bf16.xpose.msra.mxu0 0
        %1003 = vmatprep.subr.bf16.mxu0 0
        %1004 = vmatpush1.bf16.xpose.msra.mxu0 0
        %1005 = vmatprep.subr.bf16.mxu0 0
        %1006 = vmatpush1.bf16.xpose.msra.mxu0 0
        %1007 = vmatprep.subr.bf16.mxu0 0
        %1008 = vmatpush1.bf16.xpose.msra.mxu0 0
        %1009 = vmatprep.subr.bf16.mxu0 0
        %1010 = vmatpush1.bf16.xpose.msra.mxu0 0
        %1011 = vmatprep.mubr.bf16.mxu0 0
        %1012 = vmatmul.mubr.bf16.gmra.mrb[0].mxu0 %v974
        %v1013 = vpop.f32.mrb[0].mxu0
        %v1014 = vadd.f32 0.0, %v1013
        %v1015 = vpop.f32.mrb[0].mxu0
        %v1016 = vpop.f32.mrb[0].mxu0
        %v1017 = vpop.f32.mrb[0].mxu0
        %1018 = vdwg.mxu0
        %v1019 = vsel %vm791, -1e+30, %v1014
        %v1020 = vsel %vm844, %v1019, -inf
        %1021 = vmax.xlane.f32.xlu0 %v1020
        %v1022 = vpop.xlane.xlu0 %1021
        %v1023 = vsub.f32 %v1019, %v1022
        %v1024 = vmul.f32 %v1023, 1.442695
        %v1025 = vpow.pop %v1024
        %v1026 = vsel %vm844, %v1025, 0.0
        %1027 = vadd.xlane.f32.xlu0 %v1026
        %v1028 = vpop.xlane.xlu0 %1027
        %v1029 = vrcp.pop %v1028
        %v1030 = vmul.f32 %v1025, %v1029
        %s1031 = scalar_lea.vmem %s592, 8 [#allocation19]
        %1032 = vst.msk [vmem:[%s1031] sm:$0xff] %vm844, %v1030
        %v1033 = vpack.c.bf16 %v1030, %v1030
        %v1035 = vunpack.c.l.b16 %v962
        %v1036 = vpack.c.b16 %v1035, %v1035
        %1037 = vrot.lane.b32.xlu0 %v1036, 112
        %v1038 = vpop.permute.xlu0 %1037
        %v1040 = vsel %vm844, %v1033, 0
        %v1043 = vsel %vm861, %v1038, 0
        %1045 = vmatprep.subr.bf16.mxu0 0
        %1046 = vmatpush1.bf16.msra.mxu0 %v1043
        %1047 = vmatprep.subr.bf16.mxu0 0
        %1048 = vmatpush1.bf16.msra.mxu0 0
        %1049 = vmatprep.subr.bf16.mxu0 0
        %1050 = vmatpush1.bf16.msra.mxu0 0
        %1051 = vmatprep.subr.bf16.mxu0 0
        %1052 = vmatpush1.bf16.msra.mxu0 0
        %1053 = vmatprep.subr.bf16.mxu0 0
        %1054 = vmatpush1.bf16.msra.mxu0 0
        %1055 = vmatprep.subr.bf16.mxu0 0
        %1056 = vmatpush1.bf16.msra.mxu0 0
        %1057 = vmatprep.subr.bf16.mxu0 0
        %1058 = vmatpush1.bf16.msra.mxu0 0
        %1059 = vmatprep.subr.bf16.mxu0 0
        %1060 = vmatpush1.bf16.msra.mxu0 0
        %1061 = vmatprep.subr.bf16.mxu0 0
        %1062 = vmatpush1.bf16.msra.mxu0 0
        %1063 = vmatprep.subr.bf16.mxu0 0
        %1064 = vmatpush1.bf16.msra.mxu0 0
        %1065 = vmatprep.subr.bf16.mxu0 0
        %1066 = vmatpush1.bf16.msra.mxu0 0
        %1067 = vmatprep.subr.bf16.mxu0 0
        %1068 = vmatpush1.bf16.msra.mxu0 0
        %1069 = vmatprep.subr.bf16.mxu0 0
        %1070 = vmatpush1.bf16.msra.mxu0 0
        %1071 = vmatprep.subr.bf16.mxu0 0
        %1072 = vmatpush1.bf16.msra.mxu0 0
        %1073 = vmatprep.subr.bf16.mxu0 0
        %1074 = vmatpush1.bf16.msra.mxu0 0
        %1075 = vmatprep.subr.bf16.mxu0 0
        %1076 = vmatpush1.bf16.msra.mxu0 0
        %1077 = vmatprep.mubr.bf16.mxu0 0
        %1078 = vmatmul.mubr.bf16.gmra.mrb[0].mxu0 %v1040
        %v1079 = vpop.f32.mrb[0].mxu0
        %v1080 = vadd.f32 0.0, %v1079
        %v1081 = vpop.f32.mrb[0].mxu0
        %v1082 = vpop.f32.mrb[0].mxu0
        %v1083 = vpop.f32.mrb[0].mxu0
        %1084 = vdwg.mxu0
        %v1085 = vld [vmem:[#allocation17 + $0x8] sm:$0xf]
        %v1086 = vld [vmem:[#allocation17 + $0xc] sm:$0xf]
        %v1087 = vld [vmem:[#allocation5] sm:$0xff]
        %v1088 = vpack.c.bf16 %v1080, %v1080
        %v1091 = vunpack.c.l.b16 %v1085
        %v1092 = vunpack.c.l.b16 %v1086
        %v1093 = vpack.c.b16 %v1092, %v1091
        %v1096 = vsel %vm796, %v1088, 0
        %1098 = vmatprep.subr.bf16.mxu0 0
        %1099 = vmatpush1.bf16.msra.mxu0 %v1093
        %1100 = vmatprep.subr.bf16.mxu0 0
        %1101 = vmatpush1.bf16.msra.mxu0 0
        %1102 = vmatprep.subr.bf16.mxu0 0
        %1103 = vmatpush1.bf16.msra.mxu0 0
        %1104 = vmatprep.subr.bf16.mxu0 0
        %1105 = vmatpush1.bf16.msra.mxu0 0
        %1106 = vmatprep.subr.bf16.mxu0 0
        %1107 = vmatpush1.bf16.msra.mxu0 0
        %1108 = vmatprep.subr.bf16.mxu0 0
        %1109 = vmatpush1.bf16.msra.mxu0 0
        %1110 = vmatprep.subr.bf16.mxu0 0
        %1111 = vmatpush1.bf16.msra.mxu0 0
        %1112 = vmatprep.subr.bf16.mxu0 0
        %1113 = vmatpush1.bf16.msra.mxu0 0
        %1114 = vmatprep.subr.bf16.mxu0 0
        %1115 = vmatpush1.bf16.msra.mxu0 0
        %1116 = vmatprep.subr.bf16.mxu0 0
        %1117 = vmatpush1.bf16.msra.mxu0 0
        %1118 = vmatprep.subr.bf16.mxu0 0
        %1119 = vmatpush1.bf16.msra.mxu0 0
        %1120 = vmatprep.subr.bf16.mxu0 0
        %1121 = vmatpush1.bf16.msra.mxu0 0
        %1122 = vmatprep.subr.bf16.mxu0 0
        %1123 = vmatpush1.bf16.msra.mxu0 0
        %1124 = vmatprep.subr.bf16.mxu0 0
        %1125 = vmatpush1.bf16.msra.mxu0 0
        %1126 = vmatprep.subr.bf16.mxu0 0
        %1127 = vmatpush1.bf16.msra.mxu0 0
        %1128 = vmatprep.subr.bf16.mxu0 0
        %1129 = vmatpush1.bf16.msra.mxu0 0
        %1130 = vmatprep.mubr.bf16.mxu0 0
        %1131 = vmatmul.mubr.bf16.gmra.mrb[0].mxu0 %v1096
        %v1132 = vpop.f32.mrb[0].mxu0
        %v1133 = vadd.f32 0.0, %v1132
        %v1134 = vpop.f32.mrb[0].mxu0
        %v1135 = vpop.f32.mrb[0].mxu0
        %v1136 = vpop.f32.mrb[0].mxu0
        %1137 = vdwg.mxu0
        %v1138 = vadd.f32 %v1087, %v1133
        %1139 = vst.msk [vmem:[#allocation5] sm:$0xff] %vm742, %v1138
        %v1140 = vld [vmem:[#allocation5] sm:$0xff]
        %v1141 = vld [vmem:[%s8] sm:$0x1]
        %v1143 = vlaneseq
        %v1144 = vshrl.u32 %v1143, 7
        %v1145 = vsub.s32 0, %v1144
        %v1146 = vrot.slane %v1141, %v1145
        %v1148 = vadd.f32 %v1140, %v1146
        %v1149 = vadd.f32 %v1148, %v724
        %v1150 = vsel %vm742, %v1149, 0.0
        %1151 = vadd.xlane.f32.xlu0 %v1150
        %v1152 = vpop.xlane.xlu0 %1151
        %v1153 = vrcp.pop 32.0
        %v1154 = vmul.f32 %v1152, %v1153
        %v1155 = vsub.f32 %v1149, %v1154
        %v1156 = vmul.f32 %v1155, %v1155
        %v1157 = vsel %vm742, %v1156, 0.0
        %1158 = vadd.xlane.f32.xlu0 %v1157
        %v1159 = vpop.xlane.xlu0 %1158
        %v1160 = vrcp.pop 31.0
        %v1161 = vmul.f32 %v1159, %v1160
        %v1162 = vrsqrt.pop %v1161
        %v1163 = vmul.f32 %v1161, %v1162
        %vm1164 = vcmp.eq.f32.partialorder %v1161, inf
        %v1165 = vsel %vm1164, %v1161, %v1163
        %vm1166 = vcmp.eq.f32.partialorder %v1161, 0.0
        %v1167 = vand.u32 %v1161, 2147483648
        %v1168 = vsel %vm1166, %v1167, %v1165
        %v1169 = vadd.f32 %v1168, 0.001
        %v1170 = vrcp.pop %v1169
        %v1171 = vmul.f32 %v1155, %v1170
        %v1172 = vld [vmem:[%s9] sm:$0x1]
        %v1174 = vlaneseq
        %v1175 = vshrl.u32 %v1174, 7
        %v1176 = vsub.s32 0, %v1175
        %v1177 = vrot.slane %v1172, %v1176
        %v1179 = vmul.f32 %v1171, %v1177
        %v1180 = vld [vmem:[%s10] sm:$0x1]
        %v1182 = vlaneseq
        %v1183 = vshrl.u32 %v1182, 7
        %v1184 = vsub.s32 0, %v1183
        %v1185 = vrot.slane %v1180, %v1184
        %v1187 = vadd.f32 %v1179, %v1185
        %1188 = vst.msk [vmem:[%s585] sm:$0xff] %vm742, %v1187
        %s1189 = sand.u32 %s313, 1
        %s1190 = scalar_lea.sflag [#allocation8], %s1189
        %s1191 = sand.u32 %s313, 1
        %s1192 = smul.addr %s1191, 8
        %s1193 = scalar_lea.vmem [#allocation18], %s1192
        %s1194 = sand.u32 %s341, 1
        %s1195 = scalar_lea.sflag [#allocation20], %s1194
        %s1196 = sand.u32 %s341, 1
        %s1197 = smul.addr %s1196, 16
        %s1198 = scalar_lea.vmem [#allocation19], %s1197
        // Predicated region
        $region97: #{tpu_custom_call.1} parent=63 // pred_check
          %p1199 = pneg %p323
        $region98: #{tpu_custom_call.1} parent=63 // pred_check_branch
          %1201 = sbr.rel (%p1199) target = $region100
        $region99: #{tpu_custom_call.1} parent=63 // pred_region
          %s1203 = ssub.s32 128, 128
          %1204 = vsyncadd %s1190, %s1203
          %s1205 = sadd.s32 %s43, %s42
          %s1206 = smul.addr %s1205, 128
          %s1207 = scalar_lea.hbm %s11, %s1206
          %s1209 = sshll.u32 %s1193, 4
          %s1210 = int_to_ptr.vmem [resolvable:$true] %s1209
          %1212 = dma.vmem_to_hbm [thread:$0]  %s1210, 128, %s1207, %s1190
        $region100: #{tpu_custom_call.1} parent=63 // pred_fallthru
          _
        // Predicated region
        $region101: #{tpu_custom_call.1} parent=63 // pred_check
          %p1213 = pneg %p351
        $region102: #{tpu_custom_call.1} parent=63 // pred_check_branch
          %1215 = sbr.rel (%p1213) target = $region104
        $region103: #{tpu_custom_call.1} parent=63 // pred_region
          %s1217 = ssub.s32 256, 256
          %1218 = vsyncadd %s1195, %s1217
          %s1219 = sadd.s32 %s43, %s42
          %s1220 = smul.addr %s1219, 128
          %s1221 = scalar_lea.hbm %s12, %s1220
          %s1222 = sshll.u32 %s1198, 4
          %s1223 = int_to_ptr.vmem [resolvable:$true] %s1222
          %1228 = dma.vmem_to_hbm [thread:$0]  %s1223, 256, %s1221, %s1195, 128, 256, 8
        $region104: #{tpu_custom_call.1} parent=63 // pred_fallthru
          _
      $region64: #{tpu_custom_call.1} parent=5 // pred_fallthru
        _
      %p1229 = scmp.le.s32.totalorder 2, %s33
      // Predicated region
      $region105: #{tpu_custom_call.1} parent=5 // pred_check
        %p1230 = pneg %p1229
      $region106: #{tpu_custom_call.1} parent=5 // pred_check_branch
        %1232 = sbr.rel (%p1230) target = $region108
      $region107: #{tpu_custom_call.1} parent=5 // pred_region
        %s1233 = ssub.s32 %s33, 2
        // Predicated region
        $region109: #{tpu_custom_call.1} parent=107 // pred_check
          %p1234 = pneg %p329
        $region110: #{tpu_custom_call.1} parent=107 // pred_check_branch
          %1236 = sbr.rel (%p1234) target = $region112
        $region111: #{tpu_custom_call.1} parent=107 // pred_region
          %s1237 = sand.u32 %s314, 1
          %s1238 = scalar_lea.sflag [#allocation8], %s1237
          %s1239 = sand.u32 %s314, 1
          %s1240 = smul.addr %s1239, 8
          %s1241 = scalar_lea.vmem [#allocation18], %s1240
          %1242 = dma.done %s1238, 128
        $region112: #{tpu_custom_call.1} parent=107 // pred_fallthru
          _
        // Predicated region
        $region113: #{tpu_custom_call.1} parent=107 // pred_check
          %p1243 = pneg %p357
        $region114: #{tpu_custom_call.1} parent=107 // pred_check_branch
          %1245 = sbr.rel (%p1243) target = $region116
        $region115: #{tpu_custom_call.1} parent=107 // pred_region
          %s1246 = sand.u32 %s342, 1
          %s1247 = scalar_lea.sflag [#allocation20], %s1246
          %s1248 = sand.u32 %s342, 1
          %s1249 = smul.addr %s1248, 16
          %s1250 = scalar_lea.vmem [#allocation19], %s1249
          %1251 = dma.done %s1247, 256
        $region116: #{tpu_custom_call.1} parent=107 // pred_fallthru
          _
      $region108: #{tpu_custom_call.1} parent=5 // pred_fallthru
        _
    $region6: #{tpu_custom_call.1} parent=1 // loop_footer
      %s37 = sadd.s32 1, %s33
    $region7: #{tpu_custom_call.1} parent=1 // loop_footer_branch
      %32 = sbr.rel target = $region3
    $region8: #{tpu_custom_call.1} parent=1 // loop_exit
      _
    %1252 = vsyncpa [#allocation7], 1
    %s1253 = scalar_lea.sflag [#allocation7], 1
    %1254 = vsyncpa %s1253, 1
    %1255 = vsyncpa [#allocation10], 1
    %s1256 = scalar_lea.sflag [#allocation10], 1
    %1257 = vsyncpa %s1256, 1
    %1258 = vsyncpa [#allocation13], 1
    %1259 = vsyncpa [#allocation16], 1
    %1260 = vsyncpa [#allocation8], 1
    %s1261 = scalar_lea.sflag [#allocation8], 1
    %1262 = vsyncpa %s1261, 1
    %1263 = vsyncpa [#allocation20], 1
    %s1264 = scalar_lea.sflag [#allocation20], 1
    %1265 = vsyncpa %s1264, 1

</llo_original>
